<compile_context>
chip_gen: v6e
topology: v6e:2x2x1
jax: 0.10.0
libtpu: 0.0.40
codegen_flags: <defaults>
</compile_context>

<pallas_src>
import jax
import jax.numpy as jnp
from jax.experimental import pallas as pl
from jax.experimental.pallas import tpu as pltpu

# ---------------- model hyper-parameters (small, consistent with the module) ----
BATCH = 2
SEQ = 8
N_STATIC = 6
N_DYNAMIC = 12
EMB = 20
INPUT_SIZE = N_DYNAMIC + EMB          # 32  (embedding=True branch)
HIDDEN = 32
NUM_LAYERS = 2
OUTPUT_SIZE = 4
FEAT = N_STATIC + N_DYNAMIC           # 18 raw input features
GATES = 4 * HIDDEN                    # 128 = exactly one vreg lane width
B_PAD = 8                             # pad batch to one full sublane group


# --------------------------------- Pallas kernel --------------------------------
def bilstm_kernel(xs_ref,                     # (B, 6)     static features @ t=0 (B padded to 8)
                  xd_ref,                     # (T*B, 12)  time-major dynamic feats
                  wembT_ref, bemb_ref,        # (6, 20), (1, 20)
                  wih0dT_ref, wih0eT_ref,     # (12, 4H), (20, 4H)   W_ih0^T split
                  b0_ref,                     # (1, 4H)   b_ih0 + b_hh0
                  wblk_ref,                   # (2H, 8H)  [[whh0^T, wih1^T],[0, whh1^T]]
                  b1_ref,                     # (1, 4H)   b_ih1 + b_hh1
                  wfcT_ref, bfc_ref,          # (H, O), (1, O)
                  out_ref):                   # (B, O)
    B = xs_ref.shape[0]                       # 8 (padded)
    T = xd_ref.shape[0] // B                  # 8
    H = HIDDEN
    G = GATES

    # ---- static embedding: Linear(6, 20) + tanh (Dropout(0.0) == identity) ----
    emb = jnp.tanh(
        jnp.dot(xs_ref[...], wembT_ref[...], preferred_element_type=jnp.float32)
        + bemb_ref[...])                                             # (B, 20)

    # time-invariant part of layer-0 gates: emb @ W_ih0[:, 12:]^T + (b_ih0 + b_hh0)
    g0_const = (jnp.dot(emb, wih0eT_ref[...], preferred_element_type=jnp.float32)
                + b0_ref[...])                                       # (B, 4H)

    # hoisted layer-0 input projection for ALL timesteps: one (T*B,12)x(12,4H) matmul.
    # Kept live as values (no VMEM scratch round-trip); per-step slabs are static
    # 8x128-aligned slices with the time-invariant constant folded in the prologue.
    pre2 = jnp.dot(xd_ref[...], wih0dT_ref[...],
                   preferred_element_type=jnp.float32)               # (T*B, 4H)
    pre = [pre2[w * B:(w + 1) * B, :] + g0_const for w in range(T)]  # T x (B, 4H)

    b1 = b1_ref[...]

    # lane mask selecting the "g" gate lanes (2H..3H) — tanh there, sigmoid elsewhere
    lane = jax.lax.broadcasted_iota(jnp.int32, (B, G), 1)
    g_lane = (lane >= 2 * H) & (lane < 3 * H)

    def gate_cell(gates, c):
        # gates: (B, 4H) with PyTorch gate order i, f, g, o along the lane dim.
        # One sigmoid + one tanh over the full 128-lane slab, lane-selected by mask.
        act = jnp.where(g_lane, jnp.tanh(gates), jax.nn.sigmoid(gates))
        i = act[:, 0 * H:1 * H]
        f = act[:, 1 * H:2 * H]
        g = act[:, 2 * H:3 * H]
        o = act[:, 3 * H:4 * H]
        c_new = f * c + i * g
        h_new = o * jnp.tanh(c_new)
        return h_new, c_new

    zeros = jnp.zeros((B, H), jnp.float32)

    # wave 0: layer-0 @ t=0 (h0_prev = 0, so no recurrent matmul needed)
    h0, c0 = gate_cell(pre[0], zeros)
    h1, c1 = zeros, zeros

    # Skewed recurrence, fully static unrolled (T=8): wave w computes
    # layer-0 @ t=w AND layer-1 @ t=w-1 with ONE (B,2H) x (2H,8H) matmul:
    #   [h0, h1] @ [[whh0^T, wih1^T], [0, whh1^T]]
    #     cols [0:4H]   -> h0 @ whh0^T               (layer-0 recurrent term)
    #     cols [4H:8H]  -> h0 @ wih1^T + h1 @ whh1^T (layer-1 gates, pre-bias)
    for w in range(1, T):
        hh = jnp.concatenate([h0, h1], axis=1)                       # (B, 2H)
        big = jnp.dot(hh, wblk_ref[...],
                      preferred_element_type=jnp.float32)            # (B, 8H)
        # consume cols [0:4H] first so (on v5e) layer-0 gate math overlaps the
        # second 128-wide MXU pass that produces cols [4H:8H]
        h0n, c0n = gate_cell(pre[w] + big[:, :G], c0)                 # L0 @ t=w
        h1, c1 = gate_cell(big[:, G:] + b1, c1)                       # L1 @ t=w-1
        h0, c0 = h0n, c0n

    # final wave: layer-1 @ t = T-1 — only the layer-1 half of the block weight
    hh = jnp.concatenate([h0, h1], axis=1)
    big1 = jnp.dot(hh, wblk_ref[:, G:], preferred_element_type=jnp.float32)  # (B, 4H)
    h1, _ = gate_cell(big1 + b1, c1)

    # fc on the last timestep of the top layer; (B, 4) partial store is negligible
    out_ref[...] = (jnp.dot(h1, wfcT_ref[...], preferred_element_type=jnp.float32)
                    + bfc_ref[...])


# --------------------------------- wrapper ---------------------------------------
@jax.jit
def custom_bilstm_forward(x, params):
    """x: (B, T, 18) float32, batch_first (PyTorch convention). Assumes B <= 8."""
    B, T, _ = x.shape
    # Split static/dynamic features, go time-major, and zero-pad the batch to a
    # full sublane group (8) in plain JAX so every in-kernel slab is a full,
    # unmasked 8x128 tile. Padded rows are discarded after the kernel.
    pad = B_PAD - B
    x_static = jnp.pad(x[:, 0, :N_STATIC], ((0, pad), (0, 0)))         # (8, 6)
    x_dyn = jnp.transpose(x[:, :, N_STATIC:], (1, 0, 2))               # (T, B, 12)
    x_dyn = jnp.pad(x_dyn, ((0, 0), (0, pad), (0, 0)))                 # (T, 8, 12)
    x_dyn = x_dyn.reshape(T * B_PAD, N_DYNAMIC)                        # (T*8, 12)

    n_in = 2 + len(params)
    out = pl.pallas_call(
        bilstm_kernel,
        out_shape=jax.ShapeDtypeStruct((B_PAD, OUTPUT_SIZE), jnp.float32),
        in_specs=[pl.BlockSpec(memory_space=pltpu.MemorySpace.VMEM)] * n_in,
        out_specs=pl.BlockSpec(memory_space=pltpu.MemorySpace.VMEM),
    )(x_static, x_dyn, *params)
    return out[:B]


# --------------------------------- params ----------------------------------------
def init_params(key):
    """Deterministic init; shapes match nn.LSTM / nn.Linear of the module."""
    k = 1.0 / jnp.sqrt(jnp.float32(HIDDEN))
    keys = jax.random.split(key, 12)
    u = lambda kk, shape: jax.random.uniform(kk, shape, jnp.float32, -k, k)

    # static_embedding: Linear(6, 20)
    w_emb = u(keys[0], (EMB, N_STATIC))
    b_emb = u(keys[1], (EMB,))
    # LSTM layer 0
    w_ih0 = u(keys[2], (4 * HIDDEN, INPUT_SIZE))
    w_hh0 = u(keys[3], (4 * HIDDEN, HIDDEN))
    b_ih0 = u(keys[4], (4 * HIDDEN,))
    b_hh0 = u(keys[5], (4 * HIDDEN,))
    # LSTM layer 1
    w_ih1 = u(keys[6], (4 * HIDDEN, HIDDEN))
    w_hh1 = u(keys[7], (4 * HIDDEN, HIDDEN))
    b_ih1 = u(keys[8], (4 * HIDDEN,))
    b_hh1 = u(keys[9], (4 * HIDDEN,))
    # fc: Linear(hidden, output)
    w_fc = u(keys[10], (OUTPUT_SIZE, HIDDEN))
    b_fc = u(keys[11], (OUTPUT_SIZE,))

    # Pre-transpose / pre-fuse weights outside the kernel:
    #  * split W_ih0^T by input columns (dynamic feats vs embedding feats)
    #  * fold the paired LSTM biases (b_ih + b_hh) — semantically identical
    #  * block weight for the skewed recurrence: [[whh0^T, wih1^T], [0, whh1^T]]
    wih0T = w_ih0.T                                                # (32, 4H)
    wblk = jnp.concatenate([
        jnp.concatenate([w_hh0.T, w_ih1.T], axis=1),               # (H, 8H)
        jnp.concatenate([jnp.zeros((HIDDEN, 4 * HIDDEN), jnp.float32),
                         w_hh1.T], axis=1),                        # (H, 8H)
    ], axis=0)                                                     # (2H, 8H)

    kernel_params = (
        w_emb.T, b_emb.reshape(1, EMB),
        wih0T[:N_DYNAMIC, :],                                      # (12, 4H)
        wih0T[N_DYNAMIC:, :],                                      # (20, 4H)
        (b_ih0 + b_hh0).reshape(1, 4 * HIDDEN),
        wblk,
        (b_ih1 + b_hh1).reshape(1, 4 * HIDDEN),
        w_fc.T, b_fc.reshape(1, OUTPUT_SIZE),
    )
    raw_params = (w_emb, b_emb, w_ih0, w_hh0, b_ih0, b_hh0,
                  w_ih1, w_hh1, b_ih1, b_hh1, w_fc, b_fc)
    return kernel_params, raw_params


# --------------------------------- pure-JAX reference -----------------------------
def reference_forward(x, raw_params):
    (w_emb, b_emb, w_ih0, w_hh0, b_ih0, b_hh0,
     w_ih1, w_hh1, b_ih1, b_hh1, w_fc, b_fc) = raw_params
    B, T, _ = x.shape
    x_static = x[:, 0, :N_STATIC]
    emb = jnp.tanh(x_static @ w_emb.T + b_emb)                     # (B, 20)
    emb_seq = jnp.repeat(emb[:, None, :], T, axis=1)
    xin = jnp.concatenate([x[:, :, N_STATIC:], emb_seq], axis=-1)  # (B, T, 32)

    def run_layer(seq, w_ih, w_hh, b_ih, b_hh):
        def cell(carry, x_t):
            h, c = carry
            g = x_t @ w_ih.T + b_ih + h @ w_hh.T + b_hh
            i, f, gg, o = jnp.split(g, 4, axis=-1)
            i, f, o = jax.nn.sigmoid(i), jax.nn.sigmoid(f), jax.nn.sigmoid(o)
            gg = jnp.tanh(gg)
            c = f * c + i * gg
            h = o * jnp.tanh(c)
            return (h, c), h
        h0 = jnp.zeros((B, HIDDEN), jnp.float32)
        (_, _), hs = jax.lax.scan(cell, (h0, h0), jnp.transpose(seq, (1, 0, 2)))
        return jnp.transpose(hs, (1, 0, 2))

    out0 = run_layer(xin, w_ih0, w_hh0, b_ih0, b_hh0)
    out1 = run_layer(out0, w_ih1, w_hh1, b_ih1, b_hh1)
    return out1[:, -1, :] @ w_fc.T + b_fc


# --------------------------------- main -------------------------------------------
if __name__ == "__main__":
    key = jax.random.PRNGKey(0)
    kx, kp = jax.random.split(key)
    x = jax.random.normal(kx, (BATCH, SEQ, FEAT), jnp.float32)

    kernel_params, raw_params = init_params(kp)

    out = custom_bilstm_forward(x, kernel_params)
    out = jax.block_until_ready(out)

    ref = reference_forward(x, raw_params)
    assert out.shape == (BATCH, OUTPUT_SIZE), out.shape
    assert jnp.allclose(out, ref, atol=1e-5, rtol=1e-4), (out, ref)

    print("KERNEL_OK")
</pallas_src>

<mosaic_0001>
module attributes {stable_mosaic.version = 11 : i64} {
  func.func @bilstm_kernel(%arg0: memref<8x6xf32, #tpu.memory_space<vmem>>, %arg1: memref<64x12xf32, #tpu.memory_space<vmem>>, %arg2: memref<6x20xf32, #tpu.memory_space<vmem>>, %arg3: memref<1x20xf32, #tpu.memory_space<vmem>>, %arg4: memref<12x128xf32, #tpu.memory_space<vmem>>, %arg5: memref<20x128xf32, #tpu.memory_space<vmem>>, %arg6: memref<1x128xf32, #tpu.memory_space<vmem>>, %arg7: memref<64x256xf32, #tpu.memory_space<vmem>>, %arg8: memref<1x128xf32, #tpu.memory_space<vmem>>, %arg9: memref<32x4xf32, #tpu.memory_space<vmem>>, %arg10: memref<1x4xf32, #tpu.memory_space<vmem>>, %arg11: memref<8x4xf32, #tpu.memory_space<vmem>>) attributes {dimension_semantics = [], scalar_prefetch = 0 : i64, scratch_operands = 0 : i64, tpu.core_type = #tpu.core_type<tc>} {
    %c0 = arith.constant 0 : index
    %c0_0 = arith.constant 0 : index
    %0 = vector.load %arg0[%c0, %c0_0] : memref<8x6xf32, #tpu.memory_space<vmem>>, vector<8x6xf32>
    %c0_1 = arith.constant 0 : index
    %c0_2 = arith.constant 0 : index
    %1 = vector.load %arg2[%c0_1, %c0_2] : memref<6x20xf32, #tpu.memory_space<vmem>>, vector<6x20xf32>
    %cst = arith.constant dense<0.000000e+00> : vector<8x20xf32>
    %2 = tpu.matmul %0, %1, %cst {dimension_numbers = #tpu.dot_dimension_numbers<[1], [0], [0], [1], [0, 0, 1, 1], [], []>} : vector<8x6xf32>, vector<6x20xf32>, vector<8x20xf32> -> vector<8x20xf32>
    %c0_3 = arith.constant 0 : index
    %c0_4 = arith.constant 0 : index
    %3 = vector.load %arg3[%c0_3, %c0_4] : memref<1x20xf32, #tpu.memory_space<vmem>>, vector<1x20xf32>
    %4 = vector.broadcast %3 : vector<1x20xf32> to vector<8x20xf32>
    %5 = arith.addf %2, %4 : vector<8x20xf32>
    %6 = math.tanh %5 : vector<8x20xf32>
    %c0_5 = arith.constant 0 : index
    %c0_6 = arith.constant 0 : index
    %7 = vector.load %arg5[%c0_5, %c0_6] : memref<20x128xf32, #tpu.memory_space<vmem>>, vector<20x128xf32>
    %cst_7 = arith.constant dense<0.000000e+00> : vector<8x128xf32>
    %8 = tpu.matmul %6, %7, %cst_7 {dimension_numbers = #tpu.dot_dimension_numbers<[1], [0], [0], [1], [0, 0, 1, 1], [], []>} : vector<8x20xf32>, vector<20x128xf32>, vector<8x128xf32> -> vector<8x128xf32>
    %c0_8 = arith.constant 0 : index
    %c0_9 = arith.constant 0 : index
    %9 = vector.load %arg6[%c0_8, %c0_9] : memref<1x128xf32, #tpu.memory_space<vmem>>, vector<1x128xf32>
    %10 = vector.broadcast %9 : vector<1x128xf32> to vector<8x128xf32>
    %11 = arith.addf %8, %10 : vector<8x128xf32>
    %c0_10 = arith.constant 0 : index
    %c0_11 = arith.constant 0 : index
    %12 = vector.load %arg1[%c0_10, %c0_11] : memref<64x12xf32, #tpu.memory_space<vmem>>, vector<64x12xf32>
    %c0_12 = arith.constant 0 : index
    %c0_13 = arith.constant 0 : index
    %13 = vector.load %arg4[%c0_12, %c0_13] : memref<12x128xf32, #tpu.memory_space<vmem>>, vector<12x128xf32>
    %cst_14 = arith.constant dense<0.000000e+00> : vector<64x128xf32>
    %14 = tpu.matmul %12, %13, %cst_14 {dimension_numbers = #tpu.dot_dimension_numbers<[1], [0], [0], [1], [0, 0, 1, 1], [], []>} : vector<64x12xf32>, vector<12x128xf32>, vector<64x128xf32> -> vector<64x128xf32>
    %15 = vector.extract_strided_slice %14 {offsets = [0, 0], sizes = [8, 128], strides = [1, 1]} : vector<64x128xf32> to vector<8x128xf32>
    %16 = arith.addf %15, %11 : vector<8x128xf32>
    %17 = vector.extract_strided_slice %14 {offsets = [8, 0], sizes = [8, 128], strides = [1, 1]} : vector<64x128xf32> to vector<8x128xf32>
    %18 = arith.addf %17, %11 : vector<8x128xf32>
    %19 = vector.extract_strided_slice %14 {offsets = [16, 0], sizes = [8, 128], strides = [1, 1]} : vector<64x128xf32> to vector<8x128xf32>
    %20 = arith.addf %19, %11 : vector<8x128xf32>
    %21 = vector.extract_strided_slice %14 {offsets = [24, 0], sizes = [8, 128], strides = [1, 1]} : vector<64x128xf32> to vector<8x128xf32>
    %22 = arith.addf %21, %11 : vector<8x128xf32>
    %23 = vector.extract_strided_slice %14 {offsets = [32, 0], sizes = [8, 128], strides = [1, 1]} : vector<64x128xf32> to vector<8x128xf32>
    %24 = arith.addf %23, %11 : vector<8x128xf32>
    %25 = vector.extract_strided_slice %14 {offsets = [40, 0], sizes = [8, 128], strides = [1, 1]} : vector<64x128xf32> to vector<8x128xf32>
    %26 = arith.addf %25, %11 : vector<8x128xf32>
    %27 = vector.extract_strided_slice %14 {offsets = [48, 0], sizes = [8, 128], strides = [1, 1]} : vector<64x128xf32> to vector<8x128xf32>
    %28 = arith.addf %27, %11 : vector<8x128xf32>
    %29 = vector.extract_strided_slice %14 {offsets = [56, 0], sizes = [8, 128], strides = [1, 1]} : vector<64x128xf32> to vector<8x128xf32>
    %30 = arith.addf %29, %11 : vector<8x128xf32>
    %c0_15 = arith.constant 0 : index
    %c0_16 = arith.constant 0 : index
    %31 = vector.load %arg8[%c0_15, %c0_16] : memref<1x128xf32, #tpu.memory_space<vmem>>, vector<1x128xf32>
    %32 = tpu.iota {dimensions = array<i32: 1>} : vector<8x128xi32>
    %c64_i32 = arith.constant 64 : i32
    %33 = vector.broadcast %c64_i32 : i32 to vector<8x128xi32>
    %34 = arith.cmpi sge, %32, %33 : vector<8x128xi32>
    %c96_i32 = arith.constant 96 : i32
    %35 = vector.broadcast %c96_i32 : i32 to vector<8x128xi32>
    %36 = arith.cmpi slt, %32, %35 : vector<8x128xi32>
    %37 = arith.andi %34, %36 : vector<8x128xi1>
    %cst_17 = arith.constant 0.000000e+00 : f32
    %38 = vector.broadcast %cst_17 : f32 to vector<8x32xf32>
    %39 = math.tanh %16 : vector<8x128xf32>
    %40 = arith.negf %16 : vector<8x128xf32>
    %41 = math.exp %40 : vector<8x128xf32>
    %cst_18 = arith.constant 1.000000e+00 : f32
    %42 = vector.broadcast %cst_18 : f32 to vector<8x128xf32>
    %43 = arith.addf %42, %41 : vector<8x128xf32>
    %44 = arith.divf %42, %43 : vector<8x128xf32>
    %45 = arith.select %37, %39, %44 : vector<8x128xi1>, vector<8x128xf32>
    %46 = vector.extract_strided_slice %45 {offsets = [0, 0], sizes = [8, 32], strides = [1, 1]} : vector<8x128xf32> to vector<8x32xf32>
    %47 = vector.extract_strided_slice %45 {offsets = [0, 32], sizes = [8, 32], strides = [1, 1]} : vector<8x128xf32> to vector<8x32xf32>
    %48 = vector.extract_strided_slice %45 {offsets = [0, 64], sizes = [8, 32], strides = [1, 1]} : vector<8x128xf32> to vector<8x32xf32>
    %49 = vector.extract_strided_slice %45 {offsets = [0, 96], sizes = [8, 32], strides = [1, 1]} : vector<8x128xf32> to vector<8x32xf32>
    %50 = arith.mulf %47, %38 : vector<8x32xf32>
    %51 = arith.mulf %46, %48 : vector<8x32xf32>
    %52 = arith.addf %50, %51 : vector<8x32xf32>
    %53 = math.tanh %52 : vector<8x32xf32>
    %54 = arith.mulf %49, %53 : vector<8x32xf32>
    %55 = tpu.concatenate %54, %38 in 1 : vector<8x32xf32>, vector<8x32xf32> -> vector<8x64xf32>
    %c0_19 = arith.constant 0 : index
    %c0_20 = arith.constant 0 : index
    %56 = vector.load %arg7[%c0_19, %c0_20] : memref<64x256xf32, #tpu.memory_space<vmem>>, vector<64x256xf32>
    %cst_21 = arith.constant dense<0.000000e+00> : vector<8x256xf32>
    %57 = tpu.matmul %55, %56, %cst_21 {dimension_numbers = #tpu.dot_dimension_numbers<[1], [0], [0], [1], [0, 0, 1, 1], [], []>} : vector<8x64xf32>, vector<64x256xf32>, vector<8x256xf32> -> vector<8x256xf32>
    %58 = vector.extract_strided_slice %57 {offsets = [0, 0], sizes = [8, 128], strides = [1, 1]} : vector<8x256xf32> to vector<8x128xf32>
    %59 = arith.addf %18, %58 : vector<8x128xf32>
    %60 = math.tanh %59 : vector<8x128xf32>
    %61 = arith.negf %59 : vector<8x128xf32>
    %62 = math.exp %61 : vector<8x128xf32>
    %cst_22 = arith.constant 1.000000e+00 : f32
    %63 = vector.broadcast %cst_22 : f32 to vector<8x128xf32>
    %64 = arith.addf %63, %62 : vector<8x128xf32>
    %65 = arith.divf %63, %64 : vector<8x128xf32>
    %66 = arith.select %37, %60, %65 : vector<8x128xi1>, vector<8x128xf32>
    %67 = vector.extract_strided_slice %66 {offsets = [0, 0], sizes = [8, 32], strides = [1, 1]} : vector<8x128xf32> to vector<8x32xf32>
    %68 = vector.extract_strided_slice %66 {offsets = [0, 32], sizes = [8, 32], strides = [1, 1]} : vector<8x128xf32> to vector<8x32xf32>
    %69 = vector.extract_strided_slice %66 {offsets = [0, 64], sizes = [8, 32], strides = [1, 1]} : vector<8x128xf32> to vector<8x32xf32>
    %70 = vector.extract_strided_slice %66 {offsets = [0, 96], sizes = [8, 32], strides = [1, 1]} : vector<8x128xf32> to vector<8x32xf32>
    %71 = arith.mulf %68, %52 : vector<8x32xf32>
    %72 = arith.mulf %67, %69 : vector<8x32xf32>
    %73 = arith.addf %71, %72 : vector<8x32xf32>
    %74 = math.tanh %73 : vector<8x32xf32>
    %75 = arith.mulf %70, %74 : vector<8x32xf32>
    %76 = vector.extract_strided_slice %57 {offsets = [0, 128], sizes = [8, 128], strides = [1, 1]} : vector<8x256xf32> to vector<8x128xf32>
    %77 = vector.broadcast %31 : vector<1x128xf32> to vector<8x128xf32>
    %78 = arith.addf %76, %77 : vector<8x128xf32>
    %79 = math.tanh %78 : vector<8x128xf32>
    %80 = arith.negf %78 : vector<8x128xf32>
    %81 = math.exp %80 : vector<8x128xf32>
    %cst_23 = arith.constant 1.000000e+00 : f32
    %82 = vector.broadcast %cst_23 : f32 to vector<8x128xf32>
    %83 = arith.addf %82, %81 : vector<8x128xf32>
    %84 = arith.divf %82, %83 : vector<8x128xf32>
    %85 = arith.select %37, %79, %84 : vector<8x128xi1>, vector<8x128xf32>
    %86 = vector.extract_strided_slice %85 {offsets = [0, 0], sizes = [8, 32], strides = [1, 1]} : vector<8x128xf32> to vector<8x32xf32>
    %87 = vector.extract_strided_slice %85 {offsets = [0, 32], sizes = [8, 32], strides = [1, 1]} : vector<8x128xf32> to vector<8x32xf32>
    %88 = vector.extract_strided_slice %85 {offsets = [0, 64], sizes = [8, 32], strides = [1, 1]} : vector<8x128xf32> to vector<8x32xf32>
    %89 = vector.extract_strided_slice %85 {offsets = [0, 96], sizes = [8, 32], strides = [1, 1]} : vector<8x128xf32> to vector<8x32xf32>
    %90 = arith.mulf %87, %38 : vector<8x32xf32>
    %91 = arith.mulf %86, %88 : vector<8x32xf32>
    %92 = arith.addf %90, %91 : vector<8x32xf32>
    %93 = math.tanh %92 : vector<8x32xf32>
    %94 = arith.mulf %89, %93 : vector<8x32xf32>
    %95 = tpu.concatenate %75, %94 in 1 : vector<8x32xf32>, vector<8x32xf32> -> vector<8x64xf32>
    %c0_24 = arith.constant 0 : index
    %c0_25 = arith.constant 0 : index
    %96 = vector.load %arg7[%c0_24, %c0_25] : memref<64x256xf32, #tpu.memory_space<vmem>>, vector<64x256xf32>
    %cst_26 = arith.constant dense<0.000000e+00> : vector<8x256xf32>
    %97 = tpu.matmul %95, %96, %cst_26 {dimension_numbers = #tpu.dot_dimension_numbers<[1], [0], [0], [1], [0, 0, 1, 1], [], []>} : vector<8x64xf32>, vector<64x256xf32>, vector<8x256xf32> -> vector<8x256xf32>
    %98 = vector.extract_strided_slice %97 {offsets = [0, 0], sizes = [8, 128], strides = [1, 1]} : vector<8x256xf32> to vector<8x128xf32>
    %99 = arith.addf %20, %98 : vector<8x128xf32>
    %100 = math.tanh %99 : vector<8x128xf32>
    %101 = arith.negf %99 : vector<8x128xf32>
    %102 = math.exp %101 : vector<8x128xf32>
    %cst_27 = arith.constant 1.000000e+00 : f32
    %103 = vector.broadcast %cst_27 : f32 to vector<8x128xf32>
    %104 = arith.addf %103, %102 : vector<8x128xf32>
    %105 = arith.divf %103, %104 : vector<8x128xf32>
    %106 = arith.select %37, %100, %105 : vector<8x128xi1>, vector<8x128xf32>
    %107 = vector.extract_strided_slice %106 {offsets = [0, 0], sizes = [8, 32], strides = [1, 1]} : vector<8x128xf32> to vector<8x32xf32>
    %108 = vector.extract_strided_slice %106 {offsets = [0, 32], sizes = [8, 32], strides = [1, 1]} : vector<8x128xf32> to vector<8x32xf32>
    %109 = vector.extract_strided_slice %106 {offsets = [0, 64], sizes = [8, 32], strides = [1, 1]} : vector<8x128xf32> to vector<8x32xf32>
    %110 = vector.extract_strided_slice %106 {offsets = [0, 96], sizes = [8, 32], strides = [1, 1]} : vector<8x128xf32> to vector<8x32xf32>
    %111 = arith.mulf %108, %73 : vector<8x32xf32>
    %112 = arith.mulf %107, %109 : vector<8x32xf32>
    %113 = arith.addf %111, %112 : vector<8x32xf32>
    %114 = math.tanh %113 : vector<8x32xf32>
    %115 = arith.mulf %110, %114 : vector<8x32xf32>
    %116 = vector.extract_strided_slice %97 {offsets = [0, 128], sizes = [8, 128], strides = [1, 1]} : vector<8x256xf32> to vector<8x128xf32>
    %117 = vector.broadcast %31 : vector<1x128xf32> to vector<8x128xf32>
    %118 = arith.addf %116, %117 : vector<8x128xf32>
    %119 = math.tanh %118 : vector<8x128xf32>
    %120 = arith.negf %118 : vector<8x128xf32>
    %121 = math.exp %120 : vector<8x128xf32>
    %cst_28 = arith.constant 1.000000e+00 : f32
    %122 = vector.broadcast %cst_28 : f32 to vector<8x128xf32>
    %123 = arith.addf %122, %121 : vector<8x128xf32>
    %124 = arith.divf %122, %123 : vector<8x128xf32>
    %125 = arith.select %37, %119, %124 : vector<8x128xi1>, vector<8x128xf32>
    %126 = vector.extract_strided_slice %125 {offsets = [0, 0], sizes = [8, 32], strides = [1, 1]} : vector<8x128xf32> to vector<8x32xf32>
    %127 = vector.extract_strided_slice %125 {offsets = [0, 32], sizes = [8, 32], strides = [1, 1]} : vector<8x128xf32> to vector<8x32xf32>
    %128 = vector.extract_strided_slice %125 {offsets = [0, 64], sizes = [8, 32], strides = [1, 1]} : vector<8x128xf32> to vector<8x32xf32>
    %129 = vector.extract_strided_slice %125 {offsets = [0, 96], sizes = [8, 32], strides = [1, 1]} : vector<8x128xf32> to vector<8x32xf32>
    %130 = arith.mulf %127, %92 : vector<8x32xf32>
    %131 = arith.mulf %126, %128 : vector<8x32xf32>
    %132 = arith.addf %130, %131 : vector<8x32xf32>
    %133 = math.tanh %132 : vector<8x32xf32>
    %134 = arith.mulf %129, %133 : vector<8x32xf32>
    %135 = tpu.concatenate %115, %134 in 1 : vector<8x32xf32>, vector<8x32xf32> -> vector<8x64xf32>
    %c0_29 = arith.constant 0 : index
    %c0_30 = arith.constant 0 : index
    %136 = vector.load %arg7[%c0_29, %c0_30] : memref<64x256xf32, #tpu.memory_space<vmem>>, vector<64x256xf32>
    %cst_31 = arith.constant dense<0.000000e+00> : vector<8x256xf32>
    %137 = tpu.matmul %135, %136, %cst_31 {dimension_numbers = #tpu.dot_dimension_numbers<[1], [0], [0], [1], [0, 0, 1, 1], [], []>} : vector<8x64xf32>, vector<64x256xf32>, vector<8x256xf32> -> vector<8x256xf32>
    %138 = vector.extract_strided_slice %137 {offsets = [0, 0], sizes = [8, 128], strides = [1, 1]} : vector<8x256xf32> to vector<8x128xf32>
    %139 = arith.addf %22, %138 : vector<8x128xf32>
    %140 = math.tanh %139 : vector<8x128xf32>
    %141 = arith.negf %139 : vector<8x128xf32>
    %142 = math.exp %141 : vector<8x128xf32>
    %cst_32 = arith.constant 1.000000e+00 : f32
    %143 = vector.broadcast %cst_32 : f32 to vector<8x128xf32>
    %144 = arith.addf %143, %142 : vector<8x128xf32>
    %145 = arith.divf %143, %144 : vector<8x128xf32>
    %146 = arith.select %37, %140, %145 : vector<8x128xi1>, vector<8x128xf32>
    %147 = vector.extract_strided_slice %146 {offsets = [0, 0], sizes = [8, 32], strides = [1, 1]} : vector<8x128xf32> to vector<8x32xf32>
    %148 = vector.extract_strided_slice %146 {offsets = [0, 32], sizes = [8, 32], strides = [1, 1]} : vector<8x128xf32> to vector<8x32xf32>
    %149 = vector.extract_strided_slice %146 {offsets = [0, 64], sizes = [8, 32], strides = [1, 1]} : vector<8x128xf32> to vector<8x32xf32>
    %150 = vector.extract_strided_slice %146 {offsets = [0, 96], sizes = [8, 32], strides = [1, 1]} : vector<8x128xf32> to vector<8x32xf32>
    %151 = arith.mulf %148, %113 : vector<8x32xf32>
    %152 = arith.mulf %147, %149 : vector<8x32xf32>
    %153 = arith.addf %151, %152 : vector<8x32xf32>
    %154 = math.tanh %153 : vector<8x32xf32>
    %155 = arith.mulf %150, %154 : vector<8x32xf32>
    %156 = vector.extract_strided_slice %137 {offsets = [0, 128], sizes = [8, 128], strides = [1, 1]} : vector<8x256xf32> to vector<8x128xf32>
    %157 = vector.broadcast %31 : vector<1x128xf32> to vector<8x128xf32>
    %158 = arith.addf %156, %157 : vector<8x128xf32>
    %159 = math.tanh %158 : vector<8x128xf32>
    %160 = arith.negf %158 : vector<8x128xf32>
    %161 = math.exp %160 : vector<8x128xf32>
    %cst_33 = arith.constant 1.000000e+00 : f32
    %162 = vector.broadcast %cst_33 : f32 to vector<8x128xf32>
    %163 = arith.addf %162, %161 : vector<8x128xf32>
    %164 = arith.divf %162, %163 : vector<8x128xf32>
    %165 = arith.select %37, %159, %164 : vector<8x128xi1>, vector<8x128xf32>
    %166 = vector.extract_strided_slice %165 {offsets = [0, 0], sizes = [8, 32], strides = [1, 1]} : vector<8x128xf32> to vector<8x32xf32>
    %167 = vector.extract_strided_slice %165 {offsets = [0, 32], sizes = [8, 32], strides = [1, 1]} : vector<8x128xf32> to vector<8x32xf32>
    %168 = vector.extract_strided_slice %165 {offsets = [0, 64], sizes = [8, 32], strides = [1, 1]} : vector<8x128xf32> to vector<8x32xf32>
    %169 = vector.extract_strided_slice %165 {offsets = [0, 96], sizes = [8, 32], strides = [1, 1]} : vector<8x128xf32> to vector<8x32xf32>
    %170 = arith.mulf %167, %132 : vector<8x32xf32>
    %171 = arith.mulf %166, %168 : vector<8x32xf32>
    %172 = arith.addf %170, %171 : vector<8x32xf32>
    %173 = math.tanh %172 : vector<8x32xf32>
    %174 = arith.mulf %169, %173 : vector<8x32xf32>
    %175 = tpu.concatenate %155, %174 in 1 : vector<8x32xf32>, vector<8x32xf32> -> vector<8x64xf32>
    %c0_34 = arith.constant 0 : index
    %c0_35 = arith.constant 0 : index
    %176 = vector.load %arg7[%c0_34, %c0_35] : memref<64x256xf32, #tpu.memory_space<vmem>>, vector<64x256xf32>
    %cst_36 = arith.constant dense<0.000000e+00> : vector<8x256xf32>
    %177 = tpu.matmul %175, %176, %cst_36 {dimension_numbers = #tpu.dot_dimension_numbers<[1], [0], [0], [1], [0, 0, 1, 1], [], []>} : vector<8x64xf32>, vector<64x256xf32>, vector<8x256xf32> -> vector<8x256xf32>
    %178 = vector.extract_strided_slice %177 {offsets = [0, 0], sizes = [8, 128], strides = [1, 1]} : vector<8x256xf32> to vector<8x128xf32>
    %179 = arith.addf %24, %178 : vector<8x128xf32>
    %180 = math.tanh %179 : vector<8x128xf32>
    %181 = arith.negf %179 : vector<8x128xf32>
    %182 = math.exp %181 : vector<8x128xf32>
    %cst_37 = arith.constant 1.000000e+00 : f32
    %183 = vector.broadcast %cst_37 : f32 to vector<8x128xf32>
    %184 = arith.addf %183, %182 : vector<8x128xf32>
    %185 = arith.divf %183, %184 : vector<8x128xf32>
    %186 = arith.select %37, %180, %185 : vector<8x128xi1>, vector<8x128xf32>
    %187 = vector.extract_strided_slice %186 {offsets = [0, 0], sizes = [8, 32], strides = [1, 1]} : vector<8x128xf32> to vector<8x32xf32>
    %188 = vector.extract_strided_slice %186 {offsets = [0, 32], sizes = [8, 32], strides = [1, 1]} : vector<8x128xf32> to vector<8x32xf32>
    %189 = vector.extract_strided_slice %186 {offsets = [0, 64], sizes = [8, 32], strides = [1, 1]} : vector<8x128xf32> to vector<8x32xf32>
    %190 = vector.extract_strided_slice %186 {offsets = [0, 96], sizes = [8, 32], strides = [1, 1]} : vector<8x128xf32> to vector<8x32xf32>
    %191 = arith.mulf %188, %153 : vector<8x32xf32>
    %192 = arith.mulf %187, %189 : vector<8x32xf32>
    %193 = arith.addf %191, %192 : vector<8x32xf32>
    %194 = math.tanh %193 : vector<8x32xf32>
    %195 = arith.mulf %190, %194 : vector<8x32xf32>
    %196 = vector.extract_strided_slice %177 {offsets = [0, 128], sizes = [8, 128], strides = [1, 1]} : vector<8x256xf32> to vector<8x128xf32>
    %197 = vector.broadcast %31 : vector<1x128xf32> to vector<8x128xf32>
    %198 = arith.addf %196, %197 : vector<8x128xf32>
    %199 = math.tanh %198 : vector<8x128xf32>
    %200 = arith.negf %198 : vector<8x128xf32>
    %201 = math.exp %200 : vector<8x128xf32>
    %cst_38 = arith.constant 1.000000e+00 : f32
    %202 = vector.broadcast %cst_38 : f32 to vector<8x128xf32>
    %203 = arith.addf %202, %201 : vector<8x128xf32>
    %204 = arith.divf %202, %203 : vector<8x128xf32>
    %205 = arith.select %37, %199, %204 : vector<8x128xi1>, vector<8x128xf32>
    %206 = vector.extract_strided_slice %205 {offsets = [0, 0], sizes = [8, 32], strides = [1, 1]} : vector<8x128xf32> to vector<8x32xf32>
    %207 = vector.extract_strided_slice %205 {offsets = [0, 32], sizes = [8, 32], strides = [1, 1]} : vector<8x128xf32> to vector<8x32xf32>
    %208 = vector.extract_strided_slice %205 {offsets = [0, 64], sizes = [8, 32], strides = [1, 1]} : vector<8x128xf32> to vector<8x32xf32>
    %209 = vector.extract_strided_slice %205 {offsets = [0, 96], sizes = [8, 32], strides = [1, 1]} : vector<8x128xf32> to vector<8x32xf32>
    %210 = arith.mulf %207, %172 : vector<8x32xf32>
    %211 = arith.mulf %206, %208 : vector<8x32xf32>
    %212 = arith.addf %210, %211 : vector<8x32xf32>
    %213 = math.tanh %212 : vector<8x32xf32>
    %214 = arith.mulf %209, %213 : vector<8x32xf32>
    %215 = tpu.concatenate %195, %214 in 1 : vector<8x32xf32>, vector<8x32xf32> -> vector<8x64xf32>
    %c0_39 = arith.constant 0 : index
    %c0_40 = arith.constant 0 : index
    %216 = vector.load %arg7[%c0_39, %c0_40] : memref<64x256xf32, #tpu.memory_space<vmem>>, vector<64x256xf32>
    %cst_41 = arith.constant dense<0.000000e+00> : vector<8x256xf32>
    %217 = tpu.matmul %215, %216, %cst_41 {dimension_numbers = #tpu.dot_dimension_numbers<[1], [0], [0], [1], [0, 0, 1, 1], [], []>} : vector<8x64xf32>, vector<64x256xf32>, vector<8x256xf32> -> vector<8x256xf32>
    %218 = vector.extract_strided_slice %217 {offsets = [0, 0], sizes = [8, 128], strides = [1, 1]} : vector<8x256xf32> to vector<8x128xf32>
    %219 = arith.addf %26, %218 : vector<8x128xf32>
    %220 = math.tanh %219 : vector<8x128xf32>
    %221 = arith.negf %219 : vector<8x128xf32>
    %222 = math.exp %221 : vector<8x128xf32>
    %cst_42 = arith.constant 1.000000e+00 : f32
    %223 = vector.broadcast %cst_42 : f32 to vector<8x128xf32>
    %224 = arith.addf %223, %222 : vector<8x128xf32>
    %225 = arith.divf %223, %224 : vector<8x128xf32>
    %226 = arith.select %37, %220, %225 : vector<8x128xi1>, vector<8x128xf32>
    %227 = vector.extract_strided_slice %226 {offsets = [0, 0], sizes = [8, 32], strides = [1, 1]} : vector<8x128xf32> to vector<8x32xf32>
    %228 = vector.extract_strided_slice %226 {offsets = [0, 32], sizes = [8, 32], strides = [1, 1]} : vector<8x128xf32> to vector<8x32xf32>
    %229 = vector.extract_strided_slice %226 {offsets = [0, 64], sizes = [8, 32], strides = [1, 1]} : vector<8x128xf32> to vector<8x32xf32>
    %230 = vector.extract_strided_slice %226 {offsets = [0, 96], sizes = [8, 32], strides = [1, 1]} : vector<8x128xf32> to vector<8x32xf32>
    %231 = arith.mulf %228, %193 : vector<8x32xf32>
    %232 = arith.mulf %227, %229 : vector<8x32xf32>
    %233 = arith.addf %231, %232 : vector<8x32xf32>
    %234 = math.tanh %233 : vector<8x32xf32>
    %235 = arith.mulf %230, %234 : vector<8x32xf32>
    %236 = vector.extract_strided_slice %217 {offsets = [0, 128], sizes = [8, 128], strides = [1, 1]} : vector<8x256xf32> to vector<8x128xf32>
    %237 = vector.broadcast %31 : vector<1x128xf32> to vector<8x128xf32>
    %238 = arith.addf %236, %237 : vector<8x128xf32>
    %239 = math.tanh %238 : vector<8x128xf32>
    %240 = arith.negf %238 : vector<8x128xf32>
    %241 = math.exp %240 : vector<8x128xf32>
    %cst_43 = arith.constant 1.000000e+00 : f32
    %242 = vector.broadcast %cst_43 : f32 to vector<8x128xf32>
    %243 = arith.addf %242, %241 : vector<8x128xf32>
    %244 = arith.divf %242, %243 : vector<8x128xf32>
    %245 = arith.select %37, %239, %244 : vector<8x128xi1>, vector<8x128xf32>
    %246 = vector.extract_strided_slice %245 {offsets = [0, 0], sizes = [8, 32], strides = [1, 1]} : vector<8x128xf32> to vector<8x32xf32>
    %247 = vector.extract_strided_slice %245 {offsets = [0, 32], sizes = [8, 32], strides = [1, 1]} : vector<8x128xf32> to vector<8x32xf32>
    %248 = vector.extract_strided_slice %245 {offsets = [0, 64], sizes = [8, 32], strides = [1, 1]} : vector<8x128xf32> to vector<8x32xf32>
    %249 = vector.extract_strided_slice %245 {offsets = [0, 96], sizes = [8, 32], strides = [1, 1]} : vector<8x128xf32> to vector<8x32xf32>
    %250 = arith.mulf %247, %212 : vector<8x32xf32>
    %251 = arith.mulf %246, %248 : vector<8x32xf32>
    %252 = arith.addf %250, %251 : vector<8x32xf32>
    %253 = math.tanh %252 : vector<8x32xf32>
    %254 = arith.mulf %249, %253 : vector<8x32xf32>
    %255 = tpu.concatenate %235, %254 in 1 : vector<8x32xf32>, vector<8x32xf32> -> vector<8x64xf32>
    %c0_44 = arith.constant 0 : index
    %c0_45 = arith.constant 0 : index
    %256 = vector.load %arg7[%c0_44, %c0_45] : memref<64x256xf32, #tpu.memory_space<vmem>>, vector<64x256xf32>
    %cst_46 = arith.constant dense<0.000000e+00> : vector<8x256xf32>
    %257 = tpu.matmul %255, %256, %cst_46 {dimension_numbers = #tpu.dot_dimension_numbers<[1], [0], [0], [1], [0, 0, 1, 1], [], []>} : vector<8x64xf32>, vector<64x256xf32>, vector<8x256xf32> -> vector<8x256xf32>
    %258 = vector.extract_strided_slice %257 {offsets = [0, 0], sizes = [8, 128], strides = [1, 1]} : vector<8x256xf32> to vector<8x128xf32>
    %259 = arith.addf %28, %258 : vector<8x128xf32>
    %260 = math.tanh %259 : vector<8x128xf32>
    %261 = arith.negf %259 : vector<8x128xf32>
    %262 = math.exp %261 : vector<8x128xf32>
    %cst_47 = arith.constant 1.000000e+00 : f32
    %263 = vector.broadcast %cst_47 : f32 to vector<8x128xf32>
    %264 = arith.addf %263, %262 : vector<8x128xf32>
    %265 = arith.divf %263, %264 : vector<8x128xf32>
    %266 = arith.select %37, %260, %265 : vector<8x128xi1>, vector<8x128xf32>
    %267 = vector.extract_strided_slice %266 {offsets = [0, 0], sizes = [8, 32], strides = [1, 1]} : vector<8x128xf32> to vector<8x32xf32>
    %268 = vector.extract_strided_slice %266 {offsets = [0, 32], sizes = [8, 32], strides = [1, 1]} : vector<8x128xf32> to vector<8x32xf32>
    %269 = vector.extract_strided_slice %266 {offsets = [0, 64], sizes = [8, 32], strides = [1, 1]} : vector<8x128xf32> to vector<8x32xf32>
    %270 = vector.extract_strided_slice %266 {offsets = [0, 96], sizes = [8, 32], strides = [1, 1]} : vector<8x128xf32> to vector<8x32xf32>
    %271 = arith.mulf %268, %233 : vector<8x32xf32>
    %272 = arith.mulf %267, %269 : vector<8x32xf32>
    %273 = arith.addf %271, %272 : vector<8x32xf32>
    %274 = math.tanh %273 : vector<8x32xf32>
    %275 = arith.mulf %270, %274 : vector<8x32xf32>
    %276 = vector.extract_strided_slice %257 {offsets = [0, 128], sizes = [8, 128], strides = [1, 1]} : vector<8x256xf32> to vector<8x128xf32>
    %277 = vector.broadcast %31 : vector<1x128xf32> to vector<8x128xf32>
    %278 = arith.addf %276, %277 : vector<8x128xf32>
    %279 = math.tanh %278 : vector<8x128xf32>
    %280 = arith.negf %278 : vector<8x128xf32>
    %281 = math.exp %280 : vector<8x128xf32>
    %cst_48 = arith.constant 1.000000e+00 : f32
    %282 = vector.broadcast %cst_48 : f32 to vector<8x128xf32>
    %283 = arith.addf %282, %281 : vector<8x128xf32>
    %284 = arith.divf %282, %283 : vector<8x128xf32>
    %285 = arith.select %37, %279, %284 : vector<8x128xi1>, vector<8x128xf32>
    %286 = vector.extract_strided_slice %285 {offsets = [0, 0], sizes = [8, 32], strides = [1, 1]} : vector<8x128xf32> to vector<8x32xf32>
    %287 = vector.extract_strided_slice %285 {offsets = [0, 32], sizes = [8, 32], strides = [1, 1]} : vector<8x128xf32> to vector<8x32xf32>
    %288 = vector.extract_strided_slice %285 {offsets = [0, 64], sizes = [8, 32], strides = [1, 1]} : vector<8x128xf32> to vector<8x32xf32>
    %289 = vector.extract_strided_slice %285 {offsets = [0, 96], sizes = [8, 32], strides = [1, 1]} : vector<8x128xf32> to vector<8x32xf32>
    %290 = arith.mulf %287, %252 : vector<8x32xf32>
    %291 = arith.mulf %286, %288 : vector<8x32xf32>
    %292 = arith.addf %290, %291 : vector<8x32xf32>
    %293 = math.tanh %292 : vector<8x32xf32>
    %294 = arith.mulf %289, %293 : vector<8x32xf32>
    %295 = tpu.concatenate %275, %294 in 1 : vector<8x32xf32>, vector<8x32xf32> -> vector<8x64xf32>
    %c0_49 = arith.constant 0 : index
    %c0_50 = arith.constant 0 : index
    %296 = vector.load %arg7[%c0_49, %c0_50] : memref<64x256xf32, #tpu.memory_space<vmem>>, vector<64x256xf32>
    %cst_51 = arith.constant dense<0.000000e+00> : vector<8x256xf32>
    %297 = tpu.matmul %295, %296, %cst_51 {dimension_numbers = #tpu.dot_dimension_numbers<[1], [0], [0], [1], [0, 0, 1, 1], [], []>} : vector<8x64xf32>, vector<64x256xf32>, vector<8x256xf32> -> vector<8x256xf32>
    %298 = vector.extract_strided_slice %297 {offsets = [0, 0], sizes = [8, 128], strides = [1, 1]} : vector<8x256xf32> to vector<8x128xf32>
    %299 = arith.addf %30, %298 : vector<8x128xf32>
    %300 = math.tanh %299 : vector<8x128xf32>
    %301 = arith.negf %299 : vector<8x128xf32>
    %302 = math.exp %301 : vector<8x128xf32>
    %cst_52 = arith.constant 1.000000e+00 : f32
    %303 = vector.broadcast %cst_52 : f32 to vector<8x128xf32>
    %304 = arith.addf %303, %302 : vector<8x128xf32>
    %305 = arith.divf %303, %304 : vector<8x128xf32>
    %306 = arith.select %37, %300, %305 : vector<8x128xi1>, vector<8x128xf32>
    %307 = vector.extract_strided_slice %306 {offsets = [0, 0], sizes = [8, 32], strides = [1, 1]} : vector<8x128xf32> to vector<8x32xf32>
    %308 = vector.extract_strided_slice %306 {offsets = [0, 32], sizes = [8, 32], strides = [1, 1]} : vector<8x128xf32> to vector<8x32xf32>
    %309 = vector.extract_strided_slice %306 {offsets = [0, 64], sizes = [8, 32], strides = [1, 1]} : vector<8x128xf32> to vector<8x32xf32>
    %310 = vector.extract_strided_slice %306 {offsets = [0, 96], sizes = [8, 32], strides = [1, 1]} : vector<8x128xf32> to vector<8x32xf32>
    %311 = arith.mulf %308, %273 : vector<8x32xf32>
    %312 = arith.mulf %307, %309 : vector<8x32xf32>
    %313 = arith.addf %311, %312 : vector<8x32xf32>
    %314 = math.tanh %313 : vector<8x32xf32>
    %315 = arith.mulf %310, %314 : vector<8x32xf32>
    %316 = vector.extract_strided_slice %297 {offsets = [0, 128], sizes = [8, 128], strides = [1, 1]} : vector<8x256xf32> to vector<8x128xf32>
    %317 = vector.broadcast %31 : vector<1x128xf32> to vector<8x128xf32>
    %318 = arith.addf %316, %317 : vector<8x128xf32>
    %319 = math.tanh %318 : vector<8x128xf32>
    %320 = arith.negf %318 : vector<8x128xf32>
    %321 = math.exp %320 : vector<8x128xf32>
    %cst_53 = arith.constant 1.000000e+00 : f32
    %322 = vector.broadcast %cst_53 : f32 to vector<8x128xf32>
    %323 = arith.addf %322, %321 : vector<8x128xf32>
    %324 = arith.divf %322, %323 : vector<8x128xf32>
    %325 = arith.select %37, %319, %324 : vector<8x128xi1>, vector<8x128xf32>
    %326 = vector.extract_strided_slice %325 {offsets = [0, 0], sizes = [8, 32], strides = [1, 1]} : vector<8x128xf32> to vector<8x32xf32>
    %327 = vector.extract_strided_slice %325 {offsets = [0, 32], sizes = [8, 32], strides = [1, 1]} : vector<8x128xf32> to vector<8x32xf32>
    %328 = vector.extract_strided_slice %325 {offsets = [0, 64], sizes = [8, 32], strides = [1, 1]} : vector<8x128xf32> to vector<8x32xf32>
    %329 = vector.extract_strided_slice %325 {offsets = [0, 96], sizes = [8, 32], strides = [1, 1]} : vector<8x128xf32> to vector<8x32xf32>
    %330 = arith.mulf %327, %292 : vector<8x32xf32>
    %331 = arith.mulf %326, %328 : vector<8x32xf32>
    %332 = arith.addf %330, %331 : vector<8x32xf32>
    %333 = math.tanh %332 : vector<8x32xf32>
    %334 = arith.mulf %329, %333 : vector<8x32xf32>
    %335 = tpu.concatenate %315, %334 in 1 : vector<8x32xf32>, vector<8x32xf32> -> vector<8x64xf32>
    %c0_54 = arith.constant 0 : index
    %c128 = arith.constant 128 : index
    %336 = vector.load %arg7[%c0_54, %c128] : memref<64x256xf32, #tpu.memory_space<vmem>>, vector<64x128xf32>
    %cst_55 = arith.constant dense<0.000000e+00> : vector<8x128xf32>
    %337 = tpu.matmul %335, %336, %cst_55 {dimension_numbers = #tpu.dot_dimension_numbers<[1], [0], [0], [1], [0, 0, 1, 1], [], []>} : vector<8x64xf32>, vector<64x128xf32>, vector<8x128xf32> -> vector<8x128xf32>
    %338 = vector.broadcast %31 : vector<1x128xf32> to vector<8x128xf32>
    %339 = arith.addf %337, %338 : vector<8x128xf32>
    %340 = math.tanh %339 : vector<8x128xf32>
    %341 = arith.negf %339 : vector<8x128xf32>
    %342 = math.exp %341 : vector<8x128xf32>
    %cst_56 = arith.constant 1.000000e+00 : f32
    %343 = vector.broadcast %cst_56 : f32 to vector<8x128xf32>
    %344 = arith.addf %343, %342 : vector<8x128xf32>
    %345 = arith.divf %343, %344 : vector<8x128xf32>
    %346 = arith.select %37, %340, %345 : vector<8x128xi1>, vector<8x128xf32>
    %347 = vector.extract_strided_slice %346 {offsets = [0, 0], sizes = [8, 32], strides = [1, 1]} : vector<8x128xf32> to vector<8x32xf32>
    %348 = vector.extract_strided_slice %346 {offsets = [0, 32], sizes = [8, 32], strides = [1, 1]} : vector<8x128xf32> to vector<8x32xf32>
    %349 = vector.extract_strided_slice %346 {offsets = [0, 64], sizes = [8, 32], strides = [1, 1]} : vector<8x128xf32> to vector<8x32xf32>
    %350 = vector.extract_strided_slice %346 {offsets = [0, 96], sizes = [8, 32], strides = [1, 1]} : vector<8x128xf32> to vector<8x32xf32>
    %351 = arith.mulf %348, %332 : vector<8x32xf32>
    %352 = arith.mulf %347, %349 : vector<8x32xf32>
    %353 = arith.addf %351, %352 : vector<8x32xf32>
    %354 = math.tanh %353 : vector<8x32xf32>
    %355 = arith.mulf %350, %354 : vector<8x32xf32>
    %c0_57 = arith.constant 0 : index
    %c0_58 = arith.constant 0 : index
    %356 = vector.load %arg9[%c0_57, %c0_58] : memref<32x4xf32, #tpu.memory_space<vmem>>, vector<32x4xf32>
    %cst_59 = arith.constant dense<0.000000e+00> : vector<8x4xf32>
    %357 = tpu.matmul %355, %356, %cst_59 {dimension_numbers = #tpu.dot_dimension_numbers<[1], [0], [0], [1], [0, 0, 1, 1], [], []>} : vector<8x32xf32>, vector<32x4xf32>, vector<8x4xf32> -> vector<8x4xf32>
    %c0_60 = arith.constant 0 : index
    %c0_61 = arith.constant 0 : index
    %358 = vector.load %arg10[%c0_60, %c0_61] : memref<1x4xf32, #tpu.memory_space<vmem>>, vector<1x4xf32>
    %359 = vector.broadcast %358 : vector<1x4xf32> to vector<8x4xf32>
    %360 = arith.addf %357, %359 : vector<8x4xf32>
    %c0_62 = arith.constant 0 : index
    %c0_63 = arith.constant 0 : index
    %361 = vector.load %arg11[%c0_62, %c0_63] : memref<8x4xf32, #tpu.memory_space<vmem>>, vector<8x4xf32>
    tpu.vector_store %arg11[%c0_62, %c0_63], %360 {strides = array<i32>} : memref<8x4xf32, #tpu.memory_space<vmem>>, vector<8x4xf32>,
    return
  }
}

</mosaic_0001>

<llo_original>
// kernel: custom_bilstm_forward.1
$region0: #{custom_bilstm_forward.1}
  #allocation0 [shape = 'u32[]', space=smem, size = 0x4, offset = 0x4, fixed_abs, tag = 'smem constant byte address 0x4 - core index']
  #allocation1 [shape = 'u32[144,128]{1,0:T(1,128)}', space=vmem, size = 0x12000, scoped, tag = 'internal scratch']
  %s0 = inlined_call_operand.vmem [shape: f32[8,6], index: 0, kind: input, shape index: {}]
  %s1 = inlined_call_operand.vmem [shape: f32[64,12], index: 1, kind: input, shape index: {}]
  %s2 = inlined_call_operand.vmem [shape: f32[6,20], index: 2, kind: input, shape index: {}]
  %s3 = inlined_call_operand.vmem [shape: f32[1,20], index: 3, kind: input, shape index: {}]
  %s4 = inlined_call_operand.vmem [shape: f32[12,128], index: 4, kind: input, shape index: {}]
  %s5 = inlined_call_operand.vmem [shape: f32[20,128], index: 5, kind: input, shape index: {}]
  %s6 = inlined_call_operand.vmem [shape: f32[1,128], index: 6, kind: input, shape index: {}]
  %s7 = inlined_call_operand.vmem [shape: f32[64,256], index: 7, kind: input, shape index: {}]
  %s8 = inlined_call_operand.vmem [shape: f32[1,128], index: 8, kind: input, shape index: {}]
  %s9 = inlined_call_operand.vmem [shape: f32[32,4], index: 9, kind: input, shape index: {}]
  %s10 = inlined_call_operand.vmem [shape: f32[1,4], index: 10, kind: input, shape index: {}]
  %s11 = inlined_call_operand.vmem [shape: f32[8,4], index: 11, kind: output, shape index: {}]
  %s12 = sld [smem:[#allocation0]]
  $region54: #{custom_bilstm_forward.1} parent=0
    _
  %s14 = ssub.s32 1, %s12
  %s15 = scalar_select 0, %s14, %s12
  // Predicated region
  $region2: #{custom_bilstm_forward.1} parent=0 // pred_check
    _
  $region3: #{custom_bilstm_forward.1} parent=0 // pred_check_branch
    %17 = sbr.rel (0) target = $region5
  $region4: #{custom_bilstm_forward.1} parent=0 // pred_region
    _
  $region5: #{custom_bilstm_forward.1} parent=0 // pred_fallthru
    _
  // Predicated region
  $region6: #{custom_bilstm_forward.1} parent=0 // pred_check
    _
  $region7: #{custom_bilstm_forward.1} parent=0 // pred_check_branch
    %19 = sbr.rel (0) target = $region9
  $region8: #{custom_bilstm_forward.1} parent=0 // pred_region
    _
  $region9: #{custom_bilstm_forward.1} parent=0 // pred_fallthru
    _
  // Predicated region
  $region10: #{custom_bilstm_forward.1} parent=0 // pred_check
    _
  $region11: #{custom_bilstm_forward.1} parent=0 // pred_check_branch
    %21 = sbr.rel (0) target = $region13
  $region12: #{custom_bilstm_forward.1} parent=0 // pred_region
    _
  $region13: #{custom_bilstm_forward.1} parent=0 // pred_fallthru
    _
  // Predicated region
  $region14: #{custom_bilstm_forward.1} parent=0 // pred_check
    _
  $region15: #{custom_bilstm_forward.1} parent=0 // pred_check_branch
    %23 = sbr.rel (0) target = $region17
  $region16: #{custom_bilstm_forward.1} parent=0 // pred_region
    _
  $region17: #{custom_bilstm_forward.1} parent=0 // pred_fallthru
    _
  // Predicated region
  $region18: #{custom_bilstm_forward.1} parent=0 // pred_check
    _
  $region19: #{custom_bilstm_forward.1} parent=0 // pred_check_branch
    %25 = sbr.rel (0) target = $region21
  $region20: #{custom_bilstm_forward.1} parent=0 // pred_region
    _
  $region21: #{custom_bilstm_forward.1} parent=0 // pred_fallthru
    _
  // Predicated region
  $region22: #{custom_bilstm_forward.1} parent=0 // pred_check
    _
  $region23: #{custom_bilstm_forward.1} parent=0 // pred_check_branch
    %27 = sbr.rel (0) target = $region25
  $region24: #{custom_bilstm_forward.1} parent=0 // pred_region
    _
  $region25: #{custom_bilstm_forward.1} parent=0 // pred_fallthru
    _
  // Predicated region
  $region26: #{custom_bilstm_forward.1} parent=0 // pred_check
    _
  $region27: #{custom_bilstm_forward.1} parent=0 // pred_check_branch
    %29 = sbr.rel (0) target = $region29
  $region28: #{custom_bilstm_forward.1} parent=0 // pred_region
    _
  $region29: #{custom_bilstm_forward.1} parent=0 // pred_fallthru
    _
  // Predicated region
  $region30: #{custom_bilstm_forward.1} parent=0 // pred_check
    _
  $region31: #{custom_bilstm_forward.1} parent=0 // pred_check_branch
    %31 = sbr.rel (0) target = $region33
  $region32: #{custom_bilstm_forward.1} parent=0 // pred_region
    _
  $region33: #{custom_bilstm_forward.1} parent=0 // pred_fallthru
    _
  // Predicated region
  $region34: #{custom_bilstm_forward.1} parent=0 // pred_check
    _
  $region35: #{custom_bilstm_forward.1} parent=0 // pred_check_branch
    %33 = sbr.rel (0) target = $region37
  $region36: #{custom_bilstm_forward.1} parent=0 // pred_region
    _
  $region37: #{custom_bilstm_forward.1} parent=0 // pred_fallthru
    _
  // Predicated region
  $region38: #{custom_bilstm_forward.1} parent=0 // pred_check
    _
  $region39: #{custom_bilstm_forward.1} parent=0 // pred_check_branch
    %35 = sbr.rel (0) target = $region41
  $region40: #{custom_bilstm_forward.1} parent=0 // pred_region
    _
  $region41: #{custom_bilstm_forward.1} parent=0 // pred_fallthru
    _
  // Predicated region
  $region42: #{custom_bilstm_forward.1} parent=0 // pred_check
    _
  $region43: #{custom_bilstm_forward.1} parent=0 // pred_check_branch
    %37 = sbr.rel (0) target = $region45
  $region44: #{custom_bilstm_forward.1} parent=0 // pred_region
    _
  $region45: #{custom_bilstm_forward.1} parent=0 // pred_fallthru
    _
  %v38 = vld [vmem:[%s0] sm:$0xff]
  %v39 = vld [vmem:[%s2] sm:$0x3f]
  %v40 = vld [vmem:[%s3] sm:$0x1]
  %v42 = vlaneseq
  %v43 = vshrl.u32 %v42, 7
  %v44 = vsub.s32 0, %v43
  %v45 = vrot.slane %v40, %v44
  %vm47 = vcmask 48128
  %v49 = vsel %vm47, %v38, 0
  %vm51 = vcmask 1045504
  %v53 = vsel %vm51, %v39, 0
  %55 = vmatprep.subr.mxu0 0.0
  %56 = vmatpush1.msra.mxu0 0.0
  %57 = vmatprep.subr.mxu0 0.0
  %58 = vmatpush1.msra.mxu0 0.0
  %59 = vmatprep.subr.mxu0 0.0
  %60 = vmatpush1.msra.mxu0 0.0
  %61 = vmatprep.subr.mxu0 0.0
  %62 = vmatpush1.msra.mxu0 0.0
  %63 = vmatprep.subr.mxu0 0.0
  %64 = vmatpush1.msra.mxu0 0.0
  %65 = vmatprep.subr.mxu0 0.0
  %66 = vmatpush1.msra.mxu0 0.0
  %67 = vmatprep.subr.mxu0 0.0
  %68 = vmatpush1.msra.mxu0 0.0
  %69 = vmatprep.subr.mxu0 0.0
  %70 = vmatpush1.msra.mxu0 0.0
  %71 = vmatprep.subr.mxu0 0.0
  %72 = vmatpush1.msra.mxu0 0.0
  %73 = vmatprep.subr.mxu0 0.0
  %74 = vmatpush1.msra.mxu0 0.0
  %75 = vmatprep.subr.mxu0 0.0
  %76 = vmatpush1.msra.mxu0 0.0
  %77 = vmatprep.subr.mxu0 0.0
  %78 = vmatpush1.msra.mxu0 0.0
  %79 = vmatprep.subr.mxu0 0.0
  %80 = vmatpush1.msra.mxu0 0.0
  %81 = vmatprep.subr.mxu0 0.0
  %82 = vmatpush1.msra.mxu0 0.0
  %83 = vmatprep.subr.mxu0 0.0
  %84 = vmatpush1.msra.mxu0 0.0
  %85 = vmatprep.subr.mxu0 0.0
  %86 = vmatpush1.msra.mxu0 %v53
  %87 = vmatprep.subr.mxu0 0.0
  %88 = vmatpush2.msra.mxu0 0.0
  %89 = vmatprep.subr.mxu0 0.0
  %90 = vmatpush2.msra.mxu0 0.0
  %91 = vmatprep.subr.mxu0 0.0
  %92 = vmatpush2.msra.mxu0 0.0
  %93 = vmatprep.subr.mxu0 0.0
  %94 = vmatpush2.msra.mxu0 0.0
  %95 = vmatprep.subr.mxu0 0.0
  %96 = vmatpush2.msra.mxu0 0.0
  %97 = vmatprep.subr.mxu0 0.0
  %98 = vmatpush2.msra.mxu0 0.0
  %99 = vmatprep.subr.mxu0 0.0
  %100 = vmatpush2.msra.mxu0 0.0
  %101 = vmatprep.subr.mxu0 0.0
  %102 = vmatpush2.msra.mxu0 0.0
  %103 = vmatprep.subr.mxu0 0.0
  %104 = vmatpush2.msra.mxu0 0.0
  %105 = vmatprep.subr.mxu0 0.0
  %106 = vmatpush2.msra.mxu0 0.0
  %107 = vmatprep.subr.mxu0 0.0
  %108 = vmatpush2.msra.mxu0 0.0
  %109 = vmatprep.subr.mxu0 0.0
  %110 = vmatpush2.msra.mxu0 0.0
  %111 = vmatprep.subr.mxu0 0.0
  %112 = vmatpush2.msra.mxu0 0.0
  %113 = vmatprep.subr.mxu0 0.0
  %114 = vmatpush2.msra.mxu0 0.0
  %115 = vmatprep.subr.mxu0 0.0
  %116 = vmatpush2.msra.mxu0 0.0
  %117 = vmatprep.subr.mxu0 0.0
  %118 = vmatpush2.msra.mxu0 0.0
  %119 = vmatprep.mubr.f32.mxu0 0.0
  %120 = vmatmul.mubr.f32.gmra.mxu0 %v49
  %v121 = vpop.f32.mrf.mxu0
  %v122 = vadd.f32 %v45, %v121
  %v123 = vpop.f32.mrf.mxu0
  %124 = vdwg.mxu0
  %v125 = vtanh.pop %v122
  %v126 = vld [vmem:[%s5] sm:$0xff]
  %v127 = vld [vmem:[%s5 + $0x8] sm:$0xff]
  %v128 = vld [vmem:[%s5 + $0x10] sm:$0xf]
  %v129 = vld [vmem:[%s6] sm:$0x1]
  %v131 = vlaneseq
  %v132 = vshrl.u32 %v131, 7
  %v133 = vsub.s32 0, %v132
  %v134 = vrot.slane %v129, %v133
  %vm136 = vcmask 162816
  %v138 = vsel %vm136, %v125, 0
  %vm140 = vcmask 1043456
  %v142 = vsel %vm140, %v128, 0
  %144 = vmatprep.subr.mxu0 0.0
  %145 = vmatpush1.msra.mxu0 0.0
  %146 = vmatprep.subr.mxu0 0.0
  %147 = vmatpush1.msra.mxu0 0.0
  %148 = vmatprep.subr.mxu0 0.0
  %149 = vmatpush1.msra.mxu0 0.0
  %150 = vmatprep.subr.mxu0 0.0
  %151 = vmatpush1.msra.mxu0 0.0
  %152 = vmatprep.subr.mxu0 0.0
  %153 = vmatpush1.msra.mxu0 0.0
  %154 = vmatprep.subr.mxu0 0.0
  %155 = vmatpush1.msra.mxu0 0.0
  %156 = vmatprep.subr.mxu0 0.0
  %157 = vmatpush1.msra.mxu0 0.0
  %158 = vmatprep.subr.mxu0 0.0
  %159 = vmatpush1.msra.mxu0 0.0
  %160 = vmatprep.subr.mxu0 0.0
  %161 = vmatpush1.msra.mxu0 0.0
  %162 = vmatprep.subr.mxu0 0.0
  %163 = vmatpush1.msra.mxu0 0.0
  %164 = vmatprep.subr.mxu0 0.0
  %165 = vmatpush1.msra.mxu0 0.0
  %166 = vmatprep.subr.mxu0 0.0
  %167 = vmatpush1.msra.mxu0 0.0
  %168 = vmatprep.subr.mxu0 0.0
  %169 = vmatpush1.msra.mxu0 0.0
  %170 = vmatprep.subr.mxu0 0.0
  %171 = vmatpush1.msra.mxu0 %v142
  %172 = vmatprep.subr.mxu0 0.0
  %173 = vmatpush1.msra.mxu0 %v127
  %174 = vmatprep.subr.mxu0 0.0
  %175 = vmatpush1.msra.mxu0 %v126
  %176 = vmatprep.subr.mxu0 0.0
  %177 = vmatpush2.msra.mxu0 0.0
  %178 = vmatprep.subr.mxu0 0.0
  %179 = vmatpush2.msra.mxu0 0.0
  %180 = vmatprep.subr.mxu0 0.0
  %181 = vmatpush2.msra.mxu0 0.0
  %182 = vmatprep.subr.mxu0 0.0
  %183 = vmatpush2.msra.mxu0 0.0
  %184 = vmatprep.subr.mxu0 0.0
  %185 = vmatpush2.msra.mxu0 0.0
  %186 = vmatprep.subr.mxu0 0.0
  %187 = vmatpush2.msra.mxu0 0.0
  %188 = vmatprep.subr.mxu0 0.0
  %189 = vmatpush2.msra.mxu0 0.0
  %190 = vmatprep.subr.mxu0 0.0
  %191 = vmatpush2.msra.mxu0 0.0
  %192 = vmatprep.subr.mxu0 0.0
  %193 = vmatpush2.msra.mxu0 0.0
  %194 = vmatprep.subr.mxu0 0.0
  %195 = vmatpush2.msra.mxu0 0.0
  %196 = vmatprep.subr.mxu0 0.0
  %197 = vmatpush2.msra.mxu0 0.0
  %198 = vmatprep.subr.mxu0 0.0
  %199 = vmatpush2.msra.mxu0 0.0
  %200 = vmatprep.subr.mxu0 0.0
  %201 = vmatpush2.msra.mxu0 0.0
  %202 = vmatprep.subr.mxu0 0.0
  %203 = vmatpush2.msra.mxu0 0.0
  %204 = vmatprep.subr.mxu0 0.0
  %205 = vmatpush2.msra.mxu0 0.0
  %206 = vmatprep.subr.mxu0 0.0
  %207 = vmatpush2.msra.mxu0 0.0
  %208 = vmatprep.mubr.f32.mxu0 0.0
  %209 = vmatmul.mubr.f32.gmra.mxu0 %v138
  %v210 = vpop.f32.mrf.mxu0
  %v211 = vadd.f32 %v134, %v210
  %v212 = vpop.f32.mrf.mxu0
  %213 = vdwg.mxu0
  %v214 = vld [vmem:[%s1] sm:$0xff]
  %v215 = vld [vmem:[%s1 + $0x8] sm:$0xff]
  %v216 = vld [vmem:[%s1 + $0x10] sm:$0xff]
  %v217 = vld [vmem:[%s1 + $0x18] sm:$0xff]
  %v218 = vld [vmem:[%s1 + $0x20] sm:$0xff]
  %v219 = vld [vmem:[%s1 + $0x28] sm:$0xff]
  %v220 = vld [vmem:[%s1 + $0x30] sm:$0xff]
  %v221 = vld [vmem:[%s1 + $0x38] sm:$0xff]
  %v222 = vld [vmem:[%s4] sm:$0xff]
  %v223 = vld [vmem:[%s4 + $0x8] sm:$0xf]
  %vm224 = vcmask 97280
  %v226 = vsel %vm224, %v214, 0
  %v229 = vsel %vm224, %v215, 0
  %v232 = vsel %vm224, %v216, 0
  %v235 = vsel %vm224, %v217, 0
  %v238 = vsel %vm224, %v218, 0
  %v241 = vsel %vm224, %v219, 0
  %v244 = vsel %vm224, %v220, 0
  %v247 = vsel %vm224, %v221, 0
  %v250 = vsel %vm140, %v223, 0
  %252 = vmatprep.subr.mxu0 0.0
  %253 = vmatpush1.msra.mxu0 0.0
  %254 = vmatprep.subr.mxu0 0.0
  %255 = vmatpush1.msra.mxu0 0.0
  %256 = vmatprep.subr.mxu0 0.0
  %257 = vmatpush1.msra.mxu0 0.0
  %258 = vmatprep.subr.mxu0 0.0
  %259 = vmatpush1.msra.mxu0 0.0
  %260 = vmatprep.subr.mxu0 0.0
  %261 = vmatpush1.msra.mxu0 0.0
  %262 = vmatprep.subr.mxu0 0.0
  %263 = vmatpush1.msra.mxu0 0.0
  %264 = vmatprep.subr.mxu0 0.0
  %265 = vmatpush1.msra.mxu0 0.0
  %266 = vmatprep.subr.mxu0 0.0
  %267 = vmatpush1.msra.mxu0 0.0
  %268 = vmatprep.subr.mxu0 0.0
  %269 = vmatpush1.msra.mxu0 0.0
  %270 = vmatprep.subr.mxu0 0.0
  %271 = vmatpush1.msra.mxu0 0.0
  %272 = vmatprep.subr.mxu0 0.0
  %273 = vmatpush1.msra.mxu0 0.0
  %274 = vmatprep.subr.mxu0 0.0
  %275 = vmatpush1.msra.mxu0 0.0
  %276 = vmatprep.subr.mxu0 0.0
  %277 = vmatpush1.msra.mxu0 0.0
  %278 = vmatprep.subr.mxu0 0.0
  %279 = vmatpush1.msra.mxu0 0.0
  %280 = vmatprep.subr.mxu0 0.0
  %281 = vmatpush1.msra.mxu0 %v250
  %282 = vmatprep.subr.mxu0 0.0
  %283 = vmatpush1.msra.mxu0 %v222
  %284 = vmatprep.subr.mxu0 0.0
  %285 = vmatpush2.msra.mxu0 0.0
  %286 = vmatprep.subr.mxu0 0.0
  %287 = vmatpush2.msra.mxu0 0.0
  %288 = vmatprep.subr.mxu0 0.0
  %289 = vmatpush2.msra.mxu0 0.0
  %290 = vmatprep.subr.mxu0 0.0
  %291 = vmatpush2.msra.mxu0 0.0
  %292 = vmatprep.subr.mxu0 0.0
  %293 = vmatpush2.msra.mxu0 0.0
  %294 = vmatprep.subr.mxu0 0.0
  %295 = vmatpush2.msra.mxu0 0.0
  %296 = vmatprep.subr.mxu0 0.0
  %297 = vmatpush2.msra.mxu0 0.0
  %298 = vmatprep.subr.mxu0 0.0
  %299 = vmatpush2.msra.mxu0 0.0
  %300 = vmatprep.subr.mxu0 0.0
  %301 = vmatpush2.msra.mxu0 0.0
  %302 = vmatprep.subr.mxu0 0.0
  %303 = vmatpush2.msra.mxu0 0.0
  %304 = vmatprep.subr.mxu0 0.0
  %305 = vmatpush2.msra.mxu0 0.0
  %306 = vmatprep.subr.mxu0 0.0
  %307 = vmatpush2.msra.mxu0 0.0
  %308 = vmatprep.subr.mxu0 0.0
  %309 = vmatpush2.msra.mxu0 0.0
  %310 = vmatprep.subr.mxu0 0.0
  %311 = vmatpush2.msra.mxu0 0.0
  %312 = vmatprep.subr.mxu0 0.0
  %313 = vmatpush2.msra.mxu0 0.0
  %314 = vmatprep.subr.mxu0 0.0
  %315 = vmatpush2.msra.mxu0 0.0
  %316 = vmatprep.mubr.f32.mxu0 0.0
  %317 = vmatmul.mubr.f32.gmra.mxu0 %v226
  %v318 = vpop.f32.mrf.mxu0
  %v319 = vadd.f32 0.0, %v318
  %v320 = vpop.f32.mrf.mxu0
  %321 = vmatprep.mubr.f32.mxu0 0.0
  %322 = vmatmul.mubr.f32.gmra.mxu0 %v229
  %v323 = vpop.f32.mrf.mxu0
  %v324 = vadd.f32 0.0, %v323
  %v325 = vpop.f32.mrf.mxu0
  %326 = vmatprep.mubr.f32.mxu0 0.0
  %327 = vmatmul.mubr.f32.gmra.mxu0 %v232
  %v328 = vpop.f32.mrf.mxu0
  %v329 = vadd.f32 0.0, %v328
  %v330 = vpop.f32.mrf.mxu0
  %331 = vmatprep.mubr.f32.mxu0 0.0
  %332 = vmatmul.mubr.f32.gmra.mxu0 %v235
  %v333 = vpop.f32.mrf.mxu0
  %v334 = vadd.f32 0.0, %v333
  %v335 = vpop.f32.mrf.mxu0
  %336 = vmatprep.mubr.f32.mxu0 0.0
  %337 = vmatmul.mubr.f32.gmra.mxu0 %v238
  %v338 = vpop.f32.mrf.mxu0
  %v339 = vadd.f32 0.0, %v338
  %v340 = vpop.f32.mrf.mxu0
  %341 = vmatprep.mubr.f32.mxu0 0.0
  %342 = vmatmul.mubr.f32.gmra.mxu0 %v241
  %v343 = vpop.f32.mrf.mxu0
  %v344 = vadd.f32 0.0, %v343
  %v345 = vpop.f32.mrf.mxu0
  %346 = vmatprep.mubr.f32.mxu0 0.0
  %347 = vmatmul.mubr.f32.gmra.mxu0 %v244
  %v348 = vpop.f32.mrf.mxu0
  %v349 = vadd.f32 0.0, %v348
  %v350 = vpop.f32.mrf.mxu0
  %351 = vmatprep.mubr.f32.mxu0 0.0
  %352 = vmatmul.mubr.f32.gmra.mxu0 %v247
  %v353 = vpop.f32.mrf.mxu0
  %v354 = vadd.f32 0.0, %v353
  %v355 = vpop.f32.mrf.mxu0
  %356 = vdwg.mxu0
  %v357 = vadd.f32 %v319, %v211
  %v358 = vadd.f32 %v324, %v211
  %v359 = vadd.f32 %v329, %v211
  %v360 = vadd.f32 %v334, %v211
  %v361 = vadd.f32 %v339, %v211
  %v362 = vadd.f32 %v344, %v211
  %v363 = vadd.f32 %v349, %v211
  %v364 = vadd.f32 %v354, %v211
  %v365 = vld [vmem:[%s8] sm:$0x1]
  %v366 = vlaneseq
  %v367 = vand.u32 %v366, 127
  %vm368 = vcmp.ge.s32.totalorder %v367, 64
  %vm369 = vcmp.lt.s32.totalorder %v367, 96
  %vm370 = vmand %vm368, %vm369
  %v371 = vtanh.pop %v357
  %v372 = vxor.u32 %v357, 2147483648
  %v373 = vmul.f32 %v372, 1.442695
  %v374 = vpow.pop %v373
  %v375 = vadd.f32 %v374, 1.0
  %v376 = vrcp.pop %v375
  %v377 = vmul.f32 1.0, %v376
  %v378 = vsel %vm370, %v371, %v377
  %v379 = vmul.f32 %v378, 0.0
  %381 = vrot.lane.b32.xlu0 %v378, 64
  %v382 = vpop.permute.xlu0 %381
  %v384 = vmul.f32 %v378, %v382
  %386 = vrot.lane.b32.xlu0 %v384, 32
  %v387 = vpop.permute.xlu0 %386
  %v389 = vadd.f32 %v379, %v387
  %v390 = vtanh.pop %v389
  %392 = vrot.lane.b32.xlu0 %v390, 64
  %v393 = vpop.permute.xlu0 %392
  %v395 = vmul.f32 %v378, %v393
  %397 = vrot.lane.b32.xlu0 %v395, 32
  %v398 = vpop.permute.xlu0 %397
  %vm400 = vcmask 261120
  %v401 = vsel %vm400, %v398, 0.0
  %v402 = vld [vmem:[%s7] sm:$0xff]
  %v403 = vld [vmem:[%s7 + $0x8] sm:$0xff]
  %v404 = vld [vmem:[%s7 + $0x10] sm:$0xff]
  %v405 = vld [vmem:[%s7 + $0x18] sm:$0xff]
  %v406 = vld [vmem:[%s7 + $0x20] sm:$0xff]
  %v407 = vld [vmem:[%s7 + $0x28] sm:$0xff]
  %v408 = vld [vmem:[%s7 + $0x30] sm:$0xff]
  %v409 = vld [vmem:[%s7 + $0x38] sm:$0xff]
  %v410 = vld [vmem:[%s7 + $0x40] sm:$0xff]
  %v411 = vld [vmem:[%s7 + $0x48] sm:$0xff]
  %v412 = vld [vmem:[%s7 + $0x50] sm:$0xff]
  %v413 = vld [vmem:[%s7 + $0x58] sm:$0xff]
  %v414 = vld [vmem:[%s7 + $0x60] sm:$0xff]
  %v415 = vld [vmem:[%s7 + $0x68] sm:$0xff]
  %v416 = vld [vmem:[%s7 + $0x70] sm:$0xff]
  %v417 = vld [vmem:[%s7 + $0x78] sm:$0xff]
  %vm418 = vcmask 523264
  %v420 = vsel %vm418, %v401, 0
  %422 = vmatprep.subr.mxu0 0.0
  %423 = vmatpush1.msra.mxu0 0.0
  %424 = vmatprep.subr.mxu0 0.0
  %425 = vmatpush1.msra.mxu0 0.0
  %426 = vmatprep.subr.mxu0 0.0
  %427 = vmatpush1.msra.mxu0 0.0
  %428 = vmatprep.subr.mxu0 0.0
  %429 = vmatpush1.msra.mxu0 0.0
  %430 = vmatprep.subr.mxu0 0.0
  %431 = vmatpush1.msra.mxu0 0.0
  %432 = vmatprep.subr.mxu0 0.0
  %433 = vmatpush1.msra.mxu0 0.0
  %434 = vmatprep.subr.mxu0 0.0
  %435 = vmatpush1.msra.mxu0 0.0
  %436 = vmatprep.subr.mxu0 0.0
  %437 = vmatpush1.msra.mxu0 0.0
  %438 = vmatprep.subr.mxu0 %v417
  %439 = vmatpush1.msra.mxu0 %v416
  %440 = vmatprep.subr.mxu0 %v415
  %441 = vmatpush1.msra.mxu0 %v414
  %442 = vmatprep.subr.mxu0 %v413
  %443 = vmatpush1.msra.mxu0 %v412
  %444 = vmatprep.subr.mxu0 %v411
  %445 = vmatpush1.msra.mxu0 %v410
  %446 = vmatprep.subr.mxu0 %v409
  %447 = vmatpush1.msra.mxu0 %v408
  %448 = vmatprep.subr.mxu0 %v407
  %449 = vmatpush1.msra.mxu0 %v406
  %450 = vmatprep.subr.mxu0 %v405
  %451 = vmatpush1.msra.mxu0 %v404
  %452 = vmatprep.subr.mxu0 %v403
  %453 = vmatpush1.msra.mxu0 %v402
  %454 = vmatprep.subr.mxu0 0.0
  %455 = vmatpush2.msra.mxu0 0.0
  %456 = vmatprep.subr.mxu0 0.0
  %457 = vmatpush2.msra.mxu0 0.0
  %458 = vmatprep.subr.mxu0 0.0
  %459 = vmatpush2.msra.mxu0 0.0
  %460 = vmatprep.subr.mxu0 0.0
  %461 = vmatpush2.msra.mxu0 0.0
  %462 = vmatprep.subr.mxu0 0.0
  %463 = vmatpush2.msra.mxu0 0.0
  %464 = vmatprep.subr.mxu0 0.0
  %465 = vmatpush2.msra.mxu0 0.0
  %466 = vmatprep.subr.mxu0 0.0
  %467 = vmatpush2.msra.mxu0 0.0
  %468 = vmatprep.subr.mxu0 0.0
  %469 = vmatpush2.msra.mxu0 0.0
  %470 = vmatprep.subr.mxu0 0.0
  %471 = vmatpush2.msra.mxu0 0.0
  %472 = vmatprep.subr.mxu0 0.0
  %473 = vmatpush2.msra.mxu0 0.0
  %474 = vmatprep.subr.mxu0 0.0
  %475 = vmatpush2.msra.mxu0 0.0
  %476 = vmatprep.subr.mxu0 0.0
  %477 = vmatpush2.msra.mxu0 0.0
  %478 = vmatprep.subr.mxu0 0.0
  %479 = vmatpush2.msra.mxu0 0.0
  %480 = vmatprep.subr.mxu0 0.0
  %481 = vmatpush2.msra.mxu0 0.0
  %482 = vmatprep.subr.mxu0 0.0
  %483 = vmatpush2.msra.mxu0 0.0
  %484 = vmatprep.subr.mxu0 0.0
  %485 = vmatpush2.msra.mxu0 0.0
  %486 = vmatprep.mubr.f32.mxu0 0.0
  %487 = vmatmul.mubr.f32.gmra.mxu0 %v420
  %v488 = vpop.f32.mrf.mxu0
  %v489 = vadd.f32 0.0, %v488
  %v490 = vpop.f32.mrf.mxu0
  %v491 = vadd.f32 0.0, %v490
  %492 = vdwg.mxu0
  %v493 = vadd.f32 %v358, %v489
  %v494 = vtanh.pop %v493
  %v495 = vxor.u32 %v493, 2147483648
  %v496 = vmul.f32 %v495, 1.442695
  %v497 = vpow.pop %v496
  %v498 = vadd.f32 %v497, 1.0
  %v499 = vrcp.pop %v498
  %v500 = vmul.f32 1.0, %v499
  %v501 = vsel %vm370, %v494, %v500
  %v502 = vmul.f32 %v501, %v389
  %504 = vrot.lane.b32.xlu0 %v501, 64
  %v505 = vpop.permute.xlu0 %504
  %v507 = vmul.f32 %v501, %v505
  %509 = vrot.lane.b32.xlu0 %v507, 32
  %v510 = vpop.permute.xlu0 %509
  %v512 = vadd.f32 %v502, %v510
  %v513 = vtanh.pop %v512
  %515 = vrot.lane.b32.xlu0 %v513, 64
  %v516 = vpop.permute.xlu0 %515
  %v518 = vmul.f32 %v501, %v516
  %v520 = vlaneseq
  %v521 = vshrl.u32 %v520, 7
  %v522 = vsub.s32 0, %v521
  %v523 = vrot.slane %v365, %v522
  %v525 = vadd.f32 %v491, %v523
  %v526 = vtanh.pop %v525
  %v527 = vxor.u32 %v525, 2147483648
  %v528 = vmul.f32 %v527, 1.442695
  %v529 = vpow.pop %v528
  %v530 = vadd.f32 %v529, 1.0
  %v531 = vrcp.pop %v530
  %v532 = vmul.f32 1.0, %v531
  %v533 = vsel %vm370, %v526, %v532
  %v534 = vmul.f32 %v533, 0.0
  %536 = vrot.lane.b32.xlu0 %v533, 64
  %v537 = vpop.permute.xlu0 %536
  %v539 = vmul.f32 %v533, %v537
  %541 = vrot.lane.b32.xlu0 %v539, 32
  %v542 = vpop.permute.xlu0 %541
  %v544 = vadd.f32 %v534, %v542
  %v545 = vtanh.pop %v544
  %547 = vrot.lane.b32.xlu0 %v545, 64
  %v548 = vpop.permute.xlu0 %547
  %v550 = vmul.f32 %v533, %v548
  %552 = vrot.lane.b32.xlu0 %v518, 32
  %v553 = vpop.permute.xlu0 %552
  %556 = vrot.lane.b32.xlu0 %v550, 64
  %v557 = vpop.permute.xlu0 %556
  %v559 = vsel %vm400, %v553, %v557
  %v561 = vsel %vm418, %v559, 0
  %563 = vmatprep.subr.mxu0 0.0
  %564 = vmatpush1.msra.mxu0 0.0
  %565 = vmatprep.subr.mxu0 0.0
  %566 = vmatpush1.msra.mxu0 0.0
  %567 = vmatprep.subr.mxu0 0.0
  %568 = vmatpush1.msra.mxu0 0.0
  %569 = vmatprep.subr.mxu0 0.0
  %570 = vmatpush1.msra.mxu0 0.0
  %571 = vmatprep.subr.mxu0 0.0
  %572 = vmatpush1.msra.mxu0 0.0
  %573 = vmatprep.subr.mxu0 0.0
  %574 = vmatpush1.msra.mxu0 0.0
  %575 = vmatprep.subr.mxu0 0.0
  %576 = vmatpush1.msra.mxu0 0.0
  %577 = vmatprep.subr.mxu0 0.0
  %578 = vmatpush1.msra.mxu0 0.0
  %579 = vmatprep.subr.mxu0 %v417
  %580 = vmatpush1.msra.mxu0 %v416
  %581 = vmatprep.subr.mxu0 %v415
  %582 = vmatpush1.msra.mxu0 %v414
  %583 = vmatprep.subr.mxu0 %v413
  %584 = vmatpush1.msra.mxu0 %v412
  %585 = vmatprep.subr.mxu0 %v411
  %586 = vmatpush1.msra.mxu0 %v410
  %587 = vmatprep.subr.mxu0 %v409
  %588 = vmatpush1.msra.mxu0 %v408
  %589 = vmatprep.subr.mxu0 %v407
  %590 = vmatpush1.msra.mxu0 %v406
  %591 = vmatprep.subr.mxu0 %v405
  %592 = vmatpush1.msra.mxu0 %v404
  %593 = vmatprep.subr.mxu0 %v403
  %594 = vmatpush1.msra.mxu0 %v402
  %595 = vmatprep.subr.mxu0 0.0
  %596 = vmatpush2.msra.mxu0 0.0
  %597 = vmatprep.subr.mxu0 0.0
  %598 = vmatpush2.msra.mxu0 0.0
  %599 = vmatprep.subr.mxu0 0.0
  %600 = vmatpush2.msra.mxu0 0.0
  %601 = vmatprep.subr.mxu0 0.0
  %602 = vmatpush2.msra.mxu0 0.0
  %603 = vmatprep.subr.mxu0 0.0
  %604 = vmatpush2.msra.mxu0 0.0
  %605 = vmatprep.subr.mxu0 0.0
  %606 = vmatpush2.msra.mxu0 0.0
  %607 = vmatprep.subr.mxu0 0.0
  %608 = vmatpush2.msra.mxu0 0.0
  %609 = vmatprep.subr.mxu0 0.0
  %610 = vmatpush2.msra.mxu0 0.0
  %611 = vmatprep.subr.mxu0 0.0
  %612 = vmatpush2.msra.mxu0 0.0
  %613 = vmatprep.subr.mxu0 0.0
  %614 = vmatpush2.msra.mxu0 0.0
  %615 = vmatprep.subr.mxu0 0.0
  %616 = vmatpush2.msra.mxu0 0.0
  %617 = vmatprep.subr.mxu0 0.0
  %618 = vmatpush2.msra.mxu0 0.0
  %619 = vmatprep.subr.mxu0 0.0
  %620 = vmatpush2.msra.mxu0 0.0
  %621 = vmatprep.subr.mxu0 0.0
  %622 = vmatpush2.msra.mxu0 0.0
  %623 = vmatprep.subr.mxu0 0.0
  %624 = vmatpush2.msra.mxu0 0.0
  %625 = vmatprep.subr.mxu0 0.0
  %626 = vmatpush2.msra.mxu0 0.0
  %627 = vmatprep.mubr.f32.mxu0 0.0
  %628 = vmatmul.mubr.f32.gmra.mxu0 %v561
  %v629 = vpop.f32.mrf.mxu0
  %v630 = vadd.f32 0.0, %v629
  %v631 = vpop.f32.mrf.mxu0
  %v632 = vadd.f32 0.0, %v631
  %633 = vdwg.mxu0
  %v634 = vadd.f32 %v359, %v630
  %v635 = vtanh.pop %v634
  %v636 = vxor.u32 %v634, 2147483648
  %v637 = vmul.f32 %v636, 1.442695
  %v638 = vpow.pop %v637
  %v639 = vadd.f32 %v638, 1.0
  %v640 = vrcp.pop %v639
  %v641 = vmul.f32 1.0, %v640
  %v642 = vsel %vm370, %v635, %v641
  %v643 = vmul.f32 %v642, %v512
  %645 = vrot.lane.b32.xlu0 %v642, 64
  %v646 = vpop.permute.xlu0 %645
  %v648 = vmul.f32 %v642, %v646
  %650 = vrot.lane.b32.xlu0 %v648, 32
  %v651 = vpop.permute.xlu0 %650
  %v653 = vadd.f32 %v643, %v651
  %v654 = vtanh.pop %v653
  %656 = vrot.lane.b32.xlu0 %v654, 64
  %v657 = vpop.permute.xlu0 %656
  %v659 = vmul.f32 %v642, %v657
  %v660 = vadd.f32 %v632, %v523
  %v661 = vtanh.pop %v660
  %v662 = vxor.u32 %v660, 2147483648
  %v663 = vmul.f32 %v662, 1.442695
  %v664 = vpow.pop %v663
  %v665 = vadd.f32 %v664, 1.0
  %v666 = vrcp.pop %v665
  %v667 = vmul.f32 1.0, %v666
  %v668 = vsel %vm370, %v661, %v667
  %v669 = vmul.f32 %v668, %v544
  %671 = vrot.lane.b32.xlu0 %v668, 64
  %v672 = vpop.permute.xlu0 %671
  %v674 = vmul.f32 %v668, %v672
  %676 = vrot.lane.b32.xlu0 %v674, 32
  %v677 = vpop.permute.xlu0 %676
  %v679 = vadd.f32 %v669, %v677
  %v680 = vtanh.pop %v679
  %682 = vrot.lane.b32.xlu0 %v680, 64
  %v683 = vpop.permute.xlu0 %682
  %v685 = vmul.f32 %v668, %v683
  %687 = vrot.lane.b32.xlu0 %v659, 32
  %v688 = vpop.permute.xlu0 %687
  %691 = vrot.lane.b32.xlu0 %v685, 64
  %v692 = vpop.permute.xlu0 %691
  %v694 = vsel %vm400, %v688, %v692
  %v696 = vsel %vm418, %v694, 0
  %698 = vmatprep.subr.mxu0 0.0
  %699 = vmatpush1.msra.mxu0 0.0
  %700 = vmatprep.subr.mxu0 0.0
  %701 = vmatpush1.msra.mxu0 0.0
  %702 = vmatprep.subr.mxu0 0.0
  %703 = vmatpush1.msra.mxu0 0.0
  %704 = vmatprep.subr.mxu0 0.0
  %705 = vmatpush1.msra.mxu0 0.0
  %706 = vmatprep.subr.mxu0 0.0
  %707 = vmatpush1.msra.mxu0 0.0
  %708 = vmatprep.subr.mxu0 0.0
  %709 = vmatpush1.msra.mxu0 0.0
  %710 = vmatprep.subr.mxu0 0.0
  %711 = vmatpush1.msra.mxu0 0.0
  %712 = vmatprep.subr.mxu0 0.0
  %713 = vmatpush1.msra.mxu0 0.0
  %714 = vmatprep.subr.mxu0 %v417
  %715 = vmatpush1.msra.mxu0 %v416
  %716 = vmatprep.subr.mxu0 %v415
  %717 = vmatpush1.msra.mxu0 %v414
  %718 = vmatprep.subr.mxu0 %v413
  %719 = vmatpush1.msra.mxu0 %v412
  %720 = vmatprep.subr.mxu0 %v411
  %721 = vmatpush1.msra.mxu0 %v410
  %722 = vmatprep.subr.mxu0 %v409
  %723 = vmatpush1.msra.mxu0 %v408
  %724 = vmatprep.subr.mxu0 %v407
  %725 = vmatpush1.msra.mxu0 %v406
  %726 = vmatprep.subr.mxu0 %v405
  %727 = vmatpush1.msra.mxu0 %v404
  %728 = vmatprep.subr.mxu0 %v403
  %729 = vmatpush1.msra.mxu0 %v402
  %730 = vmatprep.subr.mxu0 0.0
  %731 = vmatpush2.msra.mxu0 0.0
  %732 = vmatprep.subr.mxu0 0.0
  %733 = vmatpush2.msra.mxu0 0.0
  %734 = vmatprep.subr.mxu0 0.0
  %735 = vmatpush2.msra.mxu0 0.0
  %736 = vmatprep.subr.mxu0 0.0
  %737 = vmatpush2.msra.mxu0 0.0
  %738 = vmatprep.subr.mxu0 0.0
  %739 = vmatpush2.msra.mxu0 0.0
  %740 = vmatprep.subr.mxu0 0.0
  %741 = vmatpush2.msra.mxu0 0.0
  %742 = vmatprep.subr.mxu0 0.0
  %743 = vmatpush2.msra.mxu0 0.0
  %744 = vmatprep.subr.mxu0 0.0
  %745 = vmatpush2.msra.mxu0 0.0
  %746 = vmatprep.subr.mxu0 0.0
  %747 = vmatpush2.msra.mxu0 0.0
  %748 = vmatprep.subr.mxu0 0.0
  %749 = vmatpush2.msra.mxu0 0.0
  %750 = vmatprep.subr.mxu0 0.0
  %751 = vmatpush2.msra.mxu0 0.0
  %752 = vmatprep.subr.mxu0 0.0
  %753 = vmatpush2.msra.mxu0 0.0
  %754 = vmatprep.subr.mxu0 0.0
  %755 = vmatpush2.msra.mxu0 0.0
  %756 = vmatprep.subr.mxu0 0.0
  %757 = vmatpush2.msra.mxu0 0.0
  %758 = vmatprep.subr.mxu0 0.0
  %759 = vmatpush2.msra.mxu0 0.0
  %760 = vmatprep.subr.mxu0 0.0
  %761 = vmatpush2.msra.mxu0 0.0
  %762 = vmatprep.mubr.f32.mxu0 0.0
  %763 = vmatmul.mubr.f32.gmra.mxu0 %v696
  %v764 = vpop.f32.mrf.mxu0
  %v765 = vadd.f32 0.0, %v764
  %v766 = vpop.f32.mrf.mxu0
  %v767 = vadd.f32 0.0, %v766
  %768 = vdwg.mxu0
  %v769 = vadd.f32 %v360, %v765
  %v770 = vtanh.pop %v769
  %v771 = vxor.u32 %v769, 2147483648
  %v772 = vmul.f32 %v771, 1.442695
  %v773 = vpow.pop %v772
  %v774 = vadd.f32 %v773, 1.0
  %v775 = vrcp.pop %v774
  %v776 = vmul.f32 1.0, %v775
  %v777 = vsel %vm370, %v770, %v776
  %v778 = vmul.f32 %v777, %v653
  %780 = vrot.lane.b32.xlu0 %v777, 64
  %v781 = vpop.permute.xlu0 %780
  %v783 = vmul.f32 %v777, %v781
  %785 = vrot.lane.b32.xlu0 %v783, 32
  %v786 = vpop.permute.xlu0 %785
  %v788 = vadd.f32 %v778, %v786
  %v789 = vtanh.pop %v788
  %791 = vrot.lane.b32.xlu0 %v789, 64
  %v792 = vpop.permute.xlu0 %791
  %v794 = vmul.f32 %v777, %v792
  %v795 = vadd.f32 %v767, %v523
  %v796 = vtanh.pop %v795
  %v797 = vxor.u32 %v795, 2147483648
  %v798 = vmul.f32 %v797, 1.442695
  %v799 = vpow.pop %v798
  %v800 = vadd.f32 %v799, 1.0
  %v801 = vrcp.pop %v800
  %v802 = vmul.f32 1.0, %v801
  %v803 = vsel %vm370, %v796, %v802
  %v804 = vmul.f32 %v803, %v679
  %806 = vrot.lane.b32.xlu0 %v803, 64
  %v807 = vpop.permute.xlu0 %806
  %v809 = vmul.f32 %v803, %v807
  %811 = vrot.lane.b32.xlu0 %v809, 32
  %v812 = vpop.permute.xlu0 %811
  %v814 = vadd.f32 %v804, %v812
  %v815 = vtanh.pop %v814
  %817 = vrot.lane.b32.xlu0 %v815, 64
  %v818 = vpop.permute.xlu0 %817
  %v820 = vmul.f32 %v803, %v818
  %822 = vrot.lane.b32.xlu0 %v794, 32
  %v823 = vpop.permute.xlu0 %822
  %826 = vrot.lane.b32.xlu0 %v820, 64
  %v827 = vpop.permute.xlu0 %826
  %v829 = vsel %vm400, %v823, %v827
  %v831 = vsel %vm418, %v829, 0
  %833 = vmatprep.subr.mxu0 0.0
  %834 = vmatpush1.msra.mxu0 0.0
  %835 = vmatprep.subr.mxu0 0.0
  %836 = vmatpush1.msra.mxu0 0.0
  %837 = vmatprep.subr.mxu0 0.0
  %838 = vmatpush1.msra.mxu0 0.0
  %839 = vmatprep.subr.mxu0 0.0
  %840 = vmatpush1.msra.mxu0 0.0
  %841 = vmatprep.subr.mxu0 0.0
  %842 = vmatpush1.msra.mxu0 0.0
  %843 = vmatprep.subr.mxu0 0.0
  %844 = vmatpush1.msra.mxu0 0.0
  %845 = vmatprep.subr.mxu0 0.0
  %846 = vmatpush1.msra.mxu0 0.0
  %847 = vmatprep.subr.mxu0 0.0
  %848 = vmatpush1.msra.mxu0 0.0
  %849 = vmatprep.subr.mxu0 %v417
  %850 = vmatpush1.msra.mxu0 %v416
  %851 = vmatprep.subr.mxu0 %v415
  %852 = vmatpush1.msra.mxu0 %v414
  %853 = vmatprep.subr.mxu0 %v413
  %854 = vmatpush1.msra.mxu0 %v412
  %855 = vmatprep.subr.mxu0 %v411
  %856 = vmatpush1.msra.mxu0 %v410
  %857 = vmatprep.subr.mxu0 %v409
  %858 = vmatpush1.msra.mxu0 %v408
  %859 = vmatprep.subr.mxu0 %v407
  %860 = vmatpush1.msra.mxu0 %v406
  %861 = vmatprep.subr.mxu0 %v405
  %862 = vmatpush1.msra.mxu0 %v404
  %863 = vmatprep.subr.mxu0 %v403
  %864 = vmatpush1.msra.mxu0 %v402
  %865 = vmatprep.subr.mxu0 0.0
  %866 = vmatpush2.msra.mxu0 0.0
  %867 = vmatprep.subr.mxu0 0.0
  %868 = vmatpush2.msra.mxu0 0.0
  %869 = vmatprep.subr.mxu0 0.0
  %870 = vmatpush2.msra.mxu0 0.0
  %871 = vmatprep.subr.mxu0 0.0
  %872 = vmatpush2.msra.mxu0 0.0
  %873 = vmatprep.subr.mxu0 0.0
  %874 = vmatpush2.msra.mxu0 0.0
  %875 = vmatprep.subr.mxu0 0.0
  %876 = vmatpush2.msra.mxu0 0.0
  %877 = vmatprep.subr.mxu0 0.0
  %878 = vmatpush2.msra.mxu0 0.0
  %879 = vmatprep.subr.mxu0 0.0
  %880 = vmatpush2.msra.mxu0 0.0
  %881 = vmatprep.subr.mxu0 0.0
  %882 = vmatpush2.msra.mxu0 0.0
  %883 = vmatprep.subr.mxu0 0.0
  %884 = vmatpush2.msra.mxu0 0.0
  %885 = vmatprep.subr.mxu0 0.0
  %886 = vmatpush2.msra.mxu0 0.0
  %887 = vmatprep.subr.mxu0 0.0
  %888 = vmatpush2.msra.mxu0 0.0
  %889 = vmatprep.subr.mxu0 0.0
  %890 = vmatpush2.msra.mxu0 0.0
  %891 = vmatprep.subr.mxu0 0.0
  %892 = vmatpush2.msra.mxu0 0.0
  %893 = vmatprep.subr.mxu0 0.0
  %894 = vmatpush2.msra.mxu0 0.0
  %895 = vmatprep.subr.mxu0 0.0
  %896 = vmatpush2.msra.mxu0 0.0
  %897 = vmatprep.mubr.f32.mxu0 0.0
  %898 = vmatmul.mubr.f32.gmra.mxu0 %v831
  %v899 = vpop.f32.mrf.mxu0
  %v900 = vadd.f32 0.0, %v899
  %v901 = vpop.f32.mrf.mxu0
  %v902 = vadd.f32 0.0, %v901
  %903 = vdwg.mxu0
  %v904 = vadd.f32 %v361, %v900
  %v905 = vtanh.pop %v904
  %v906 = vxor.u32 %v904, 2147483648
  %v907 = vmul.f32 %v906, 1.442695
  %v908 = vpow.pop %v907
  %v909 = vadd.f32 %v908, 1.0
  %v910 = vrcp.pop %v909
  %v911 = vmul.f32 1.0, %v910
  %v912 = vsel %vm370, %v905, %v911
  %v913 = vmul.f32 %v912, %v788
  %915 = vrot.lane.b32.xlu0 %v912, 64
  %v916 = vpop.permute.xlu0 %915
  %v918 = vmul.f32 %v912, %v916
  %920 = vrot.lane.b32.xlu0 %v918, 32
  %v921 = vpop.permute.xlu0 %920
  %v923 = vadd.f32 %v913, %v921
  %v924 = vtanh.pop %v923
  %926 = vrot.lane.b32.xlu0 %v924, 64
  %v927 = vpop.permute.xlu0 %926
  %v929 = vmul.f32 %v912, %v927
  %v930 = vadd.f32 %v902, %v523
  %v931 = vtanh.pop %v930
  %v932 = vxor.u32 %v930, 2147483648
  %v933 = vmul.f32 %v932, 1.442695
  %v934 = vpow.pop %v933
  %v935 = vadd.f32 %v934, 1.0
  %v936 = vrcp.pop %v935
  %v937 = vmul.f32 1.0, %v936
  %v938 = vsel %vm370, %v931, %v937
  %v939 = vmul.f32 %v938, %v814
  %941 = vrot.lane.b32.xlu0 %v938, 64
  %v942 = vpop.permute.xlu0 %941
  %v944 = vmul.f32 %v938, %v942
  %946 = vrot.lane.b32.xlu0 %v944, 32
  %v947 = vpop.permute.xlu0 %946
  %v949 = vadd.f32 %v939, %v947
  %v950 = vtanh.pop %v949
  %952 = vrot.lane.b32.xlu0 %v950, 64
  %v953 = vpop.permute.xlu0 %952
  %v955 = vmul.f32 %v938, %v953
  %957 = vrot.lane.b32.xlu0 %v929, 32
  %v958 = vpop.permute.xlu0 %957
  %961 = vrot.lane.b32.xlu0 %v955, 64
  %v962 = vpop.permute.xlu0 %961
  %v964 = vsel %vm400, %v958, %v962
  %v966 = vsel %vm418, %v964, 0
  %968 = vmatprep.subr.mxu0 0.0
  %969 = vmatpush1.msra.mxu0 0.0
  %970 = vmatprep.subr.mxu0 0.0
  %971 = vmatpush1.msra.mxu0 0.0
  %972 = vmatprep.subr.mxu0 0.0
  %973 = vmatpush1.msra.mxu0 0.0
  %974 = vmatprep.subr.mxu0 0.0
  %975 = vmatpush1.msra.mxu0 0.0
  %976 = vmatprep.subr.mxu0 0.0
  %977 = vmatpush1.msra.mxu0 0.0
  %978 = vmatprep.subr.mxu0 0.0
  %979 = vmatpush1.msra.mxu0 0.0
  %980 = vmatprep.subr.mxu0 0.0
  %981 = vmatpush1.msra.mxu0 0.0
  %982 = vmatprep.subr.mxu0 0.0
  %983 = vmatpush1.msra.mxu0 0.0
  %984 = vmatprep.subr.mxu0 %v417
  %985 = vmatpush1.msra.mxu0 %v416
  %986 = vmatprep.subr.mxu0 %v415
  %987 = vmatpush1.msra.mxu0 %v414
  %988 = vmatprep.subr.mxu0 %v413
  %989 = vmatpush1.msra.mxu0 %v412
  %990 = vmatprep.subr.mxu0 %v411
  %991 = vmatpush1.msra.mxu0 %v410
  %992 = vmatprep.subr.mxu0 %v409
  %993 = vmatpush1.msra.mxu0 %v408
  %994 = vmatprep.subr.mxu0 %v407
  %995 = vmatpush1.msra.mxu0 %v406
  %996 = vmatprep.subr.mxu0 %v405
  %997 = vmatpush1.msra.mxu0 %v404
  %998 = vmatprep.subr.mxu0 %v403
  %999 = vmatpush1.msra.mxu0 %v402
  %1000 = vmatprep.subr.mxu0 0.0
  %1001 = vmatpush2.msra.mxu0 0.0
  %1002 = vmatprep.subr.mxu0 0.0
  %1003 = vmatpush2.msra.mxu0 0.0
  %1004 = vmatprep.subr.mxu0 0.0
  %1005 = vmatpush2.msra.mxu0 0.0
  %1006 = vmatprep.subr.mxu0 0.0
  %1007 = vmatpush2.msra.mxu0 0.0
  %1008 = vmatprep.subr.mxu0 0.0
  %1009 = vmatpush2.msra.mxu0 0.0
  %1010 = vmatprep.subr.mxu0 0.0
  %1011 = vmatpush2.msra.mxu0 0.0
  %1012 = vmatprep.subr.mxu0 0.0
  %1013 = vmatpush2.msra.mxu0 0.0
  %1014 = vmatprep.subr.mxu0 0.0
  %1015 = vmatpush2.msra.mxu0 0.0
  %1016 = vmatprep.subr.mxu0 0.0
  %1017 = vmatpush2.msra.mxu0 0.0
  %1018 = vmatprep.subr.mxu0 0.0
  %1019 = vmatpush2.msra.mxu0 0.0
  %1020 = vmatprep.subr.mxu0 0.0
  %1021 = vmatpush2.msra.mxu0 0.0
  %1022 = vmatprep.subr.mxu0 0.0
  %1023 = vmatpush2.msra.mxu0 0.0
  %1024 = vmatprep.subr.mxu0 0.0
  %1025 = vmatpush2.msra.mxu0 0.0
  %1026 = vmatprep.subr.mxu0 0.0
  %1027 = vmatpush2.msra.mxu0 0.0
  %1028 = vmatprep.subr.mxu0 0.0
  %1029 = vmatpush2.msra.mxu0 0.0
  %1030 = vmatprep.subr.mxu0 0.0
  %1031 = vmatpush2.msra.mxu0 0.0
  %1032 = vmatprep.mubr.f32.mxu0 0.0
  %1033 = vmatmul.mubr.f32.gmra.mxu0 %v966
  %v1034 = vpop.f32.mrf.mxu0
  %v1035 = vadd.f32 0.0, %v1034
  %v1036 = vpop.f32.mrf.mxu0
  %v1037 = vadd.f32 0.0, %v1036
  %1038 = vdwg.mxu0
  %v1039 = vadd.f32 %v362, %v1035
  %v1040 = vtanh.pop %v1039
  %v1041 = vxor.u32 %v1039, 2147483648
  %v1042 = vmul.f32 %v1041, 1.442695
  %v1043 = vpow.pop %v1042
  %v1044 = vadd.f32 %v1043, 1.0
  %v1045 = vrcp.pop %v1044
  %v1046 = vmul.f32 1.0, %v1045
  %v1047 = vsel %vm370, %v1040, %v1046
  %v1048 = vmul.f32 %v1047, %v923
  %1050 = vrot.lane.b32.xlu0 %v1047, 64
  %v1051 = vpop.permute.xlu0 %1050
  %v1053 = vmul.f32 %v1047, %v1051
  %1055 = vrot.lane.b32.xlu0 %v1053, 32
  %v1056 = vpop.permute.xlu0 %1055
  %v1058 = vadd.f32 %v1048, %v1056
  %v1059 = vtanh.pop %v1058
  %1061 = vrot.lane.b32.xlu0 %v1059, 64
  %v1062 = vpop.permute.xlu0 %1061
  %v1064 = vmul.f32 %v1047, %v1062
  %v1065 = vadd.f32 %v1037, %v523
  %v1066 = vtanh.pop %v1065
  %v1067 = vxor.u32 %v1065, 2147483648
  %v1068 = vmul.f32 %v1067, 1.442695
  %v1069 = vpow.pop %v1068
  %v1070 = vadd.f32 %v1069, 1.0
  %v1071 = vrcp.pop %v1070
  %v1072 = vmul.f32 1.0, %v1071
  %v1073 = vsel %vm370, %v1066, %v1072
  %v1074 = vmul.f32 %v1073, %v949
  %1076 = vrot.lane.b32.xlu0 %v1073, 64
  %v1077 = vpop.permute.xlu0 %1076
  %v1079 = vmul.f32 %v1073, %v1077
  %1081 = vrot.lane.b32.xlu0 %v1079, 32
  %v1082 = vpop.permute.xlu0 %1081
  %v1084 = vadd.f32 %v1074, %v1082
  %v1085 = vtanh.pop %v1084
  %1087 = vrot.lane.b32.xlu0 %v1085, 64
  %v1088 = vpop.permute.xlu0 %1087
  %v1090 = vmul.f32 %v1073, %v1088
  %1092 = vrot.lane.b32.xlu0 %v1064, 32
  %v1093 = vpop.permute.xlu0 %1092
  %1096 = vrot.lane.b32.xlu0 %v1090, 64
  %v1097 = vpop.permute.xlu0 %1096
  %v1099 = vsel %vm400, %v1093, %v1097
  %v1101 = vsel %vm418, %v1099, 0
  %1103 = vmatprep.subr.mxu0 0.0
  %1104 = vmatpush1.msra.mxu0 0.0
  %1105 = vmatprep.subr.mxu0 0.0
  %1106 = vmatpush1.msra.mxu0 0.0
  %1107 = vmatprep.subr.mxu0 0.0
  %1108 = vmatpush1.msra.mxu0 0.0
  %1109 = vmatprep.subr.mxu0 0.0
  %1110 = vmatpush1.msra.mxu0 0.0
  %1111 = vmatprep.subr.mxu0 0.0
  %1112 = vmatpush1.msra.mxu0 0.0
  %1113 = vmatprep.subr.mxu0 0.0
  %1114 = vmatpush1.msra.mxu0 0.0
  %1115 = vmatprep.subr.mxu0 0.0
  %1116 = vmatpush1.msra.mxu0 0.0
  %1117 = vmatprep.subr.mxu0 0.0
  %1118 = vmatpush1.msra.mxu0 0.0
  %1119 = vmatprep.subr.mxu0 %v417
  %1120 = vmatpush1.msra.mxu0 %v416
  %1121 = vmatprep.subr.mxu0 %v415
  %1122 = vmatpush1.msra.mxu0 %v414
  %1123 = vmatprep.subr.mxu0 %v413
  %1124 = vmatpush1.msra.mxu0 %v412
  %1125 = vmatprep.subr.mxu0 %v411
  %1126 = vmatpush1.msra.mxu0 %v410
  %1127 = vmatprep.subr.mxu0 %v409
  %1128 = vmatpush1.msra.mxu0 %v408
  %1129 = vmatprep.subr.mxu0 %v407
  %1130 = vmatpush1.msra.mxu0 %v406
  %1131 = vmatprep.subr.mxu0 %v405
  %1132 = vmatpush1.msra.mxu0 %v404
  %1133 = vmatprep.subr.mxu0 %v403
  %1134 = vmatpush1.msra.mxu0 %v402
  %1135 = vmatprep.subr.mxu0 0.0
  %1136 = vmatpush2.msra.mxu0 0.0
  %1137 = vmatprep.subr.mxu0 0.0
  %1138 = vmatpush2.msra.mxu0 0.0
  %1139 = vmatprep.subr.mxu0 0.0
  %1140 = vmatpush2.msra.mxu0 0.0
  %1141 = vmatprep.subr.mxu0 0.0
  %1142 = vmatpush2.msra.mxu0 0.0
  %1143 = vmatprep.subr.mxu0 0.0
  %1144 = vmatpush2.msra.mxu0 0.0
  %1145 = vmatprep.subr.mxu0 0.0
  %1146 = vmatpush2.msra.mxu0 0.0
  %1147 = vmatprep.subr.mxu0 0.0
  %1148 = vmatpush2.msra.mxu0 0.0
  %1149 = vmatprep.subr.mxu0 0.0
  %1150 = vmatpush2.msra.mxu0 0.0
  %1151 = vmatprep.subr.mxu0 0.0
  %1152 = vmatpush2.msra.mxu0 0.0
  %1153 = vmatprep.subr.mxu0 0.0
  %1154 = vmatpush2.msra.mxu0 0.0
  %1155 = vmatprep.subr.mxu0 0.0
  %1156 = vmatpush2.msra.mxu0 0.0
  %1157 = vmatprep.subr.mxu0 0.0
  %1158 = vmatpush2.msra.mxu0 0.0
  %1159 = vmatprep.subr.mxu0 0.0
  %1160 = vmatpush2.msra.mxu0 0.0
  %1161 = vmatprep.subr.mxu0 0.0
  %1162 = vmatpush2.msra.mxu0 0.0
  %1163 = vmatprep.subr.mxu0 0.0
  %1164 = vmatpush2.msra.mxu0 0.0
  %1165 = vmatprep.subr.mxu0 0.0
  %1166 = vmatpush2.msra.mxu0 0.0
  %1167 = vmatprep.mubr.f32.mxu0 0.0
  %1168 = vmatmul.mubr.f32.gmra.mxu0 %v1101
  %v1169 = vpop.f32.mrf.mxu0
  %v1170 = vadd.f32 0.0, %v1169
  %v1171 = vpop.f32.mrf.mxu0
  %v1172 = vadd.f32 0.0, %v1171
  %1173 = vdwg.mxu0
  %v1174 = vadd.f32 %v363, %v1170
  %v1175 = vtanh.pop %v1174
  %v1176 = vxor.u32 %v1174, 2147483648
  %v1177 = vmul.f32 %v1176, 1.442695
  %v1178 = vpow.pop %v1177
  %v1179 = vadd.f32 %v1178, 1.0
  %v1180 = vrcp.pop %v1179
  %v1181 = vmul.f32 1.0, %v1180
  %v1182 = vsel %vm370, %v1175, %v1181
  %v1183 = vmul.f32 %v1182, %v1058
  %1185 = vrot.lane.b32.xlu0 %v1182, 64
  %v1186 = vpop.permute.xlu0 %1185
  %v1188 = vmul.f32 %v1182, %v1186
  %1190 = vrot.lane.b32.xlu0 %v1188, 32
  %v1191 = vpop.permute.xlu0 %1190
  %v1193 = vadd.f32 %v1183, %v1191
  %v1194 = vtanh.pop %v1193
  %1196 = vrot.lane.b32.xlu0 %v1194, 64
  %v1197 = vpop.permute.xlu0 %1196
  %v1199 = vmul.f32 %v1182, %v1197
  %v1200 = vadd.f32 %v1172, %v523
  %v1201 = vtanh.pop %v1200
  %v1202 = vxor.u32 %v1200, 2147483648
  %v1203 = vmul.f32 %v1202, 1.442695
  %v1204 = vpow.pop %v1203
  %v1205 = vadd.f32 %v1204, 1.0
  %v1206 = vrcp.pop %v1205
  %v1207 = vmul.f32 1.0, %v1206
  %v1208 = vsel %vm370, %v1201, %v1207
  %v1209 = vmul.f32 %v1208, %v1084
  %1211 = vrot.lane.b32.xlu0 %v1208, 64
  %v1212 = vpop.permute.xlu0 %1211
  %v1214 = vmul.f32 %v1208, %v1212
  %1216 = vrot.lane.b32.xlu0 %v1214, 32
  %v1217 = vpop.permute.xlu0 %1216
  %v1219 = vadd.f32 %v1209, %v1217
  %v1220 = vtanh.pop %v1219
  %1222 = vrot.lane.b32.xlu0 %v1220, 64
  %v1223 = vpop.permute.xlu0 %1222
  %v1225 = vmul.f32 %v1208, %v1223
  %1227 = vrot.lane.b32.xlu0 %v1199, 32
  %v1228 = vpop.permute.xlu0 %1227
  %1231 = vrot.lane.b32.xlu0 %v1225, 64
  %v1232 = vpop.permute.xlu0 %1231
  %v1234 = vsel %vm400, %v1228, %v1232
  %v1236 = vsel %vm418, %v1234, 0
  %1238 = vmatprep.subr.mxu0 0.0
  %1239 = vmatpush1.msra.mxu0 0.0
  %1240 = vmatprep.subr.mxu0 0.0
  %1241 = vmatpush1.msra.mxu0 0.0
  %1242 = vmatprep.subr.mxu0 0.0
  %1243 = vmatpush1.msra.mxu0 0.0
  %1244 = vmatprep.subr.mxu0 0.0
  %1245 = vmatpush1.msra.mxu0 0.0
  %1246 = vmatprep.subr.mxu0 0.0
  %1247 = vmatpush1.msra.mxu0 0.0
  %1248 = vmatprep.subr.mxu0 0.0
  %1249 = vmatpush1.msra.mxu0 0.0
  %1250 = vmatprep.subr.mxu0 0.0
  %1251 = vmatpush1.msra.mxu0 0.0
  %1252 = vmatprep.subr.mxu0 0.0
  %1253 = vmatpush1.msra.mxu0 0.0
  %1254 = vmatprep.subr.mxu0 %v417
  %1255 = vmatpush1.msra.mxu0 %v416
  %1256 = vmatprep.subr.mxu0 %v415
  %1257 = vmatpush1.msra.mxu0 %v414
  %1258 = vmatprep.subr.mxu0 %v413
  %1259 = vmatpush1.msra.mxu0 %v412
  %1260 = vmatprep.subr.mxu0 %v411
  %1261 = vmatpush1.msra.mxu0 %v410
  %1262 = vmatprep.subr.mxu0 %v409
  %1263 = vmatpush1.msra.mxu0 %v408
  %1264 = vmatprep.subr.mxu0 %v407
  %1265 = vmatpush1.msra.mxu0 %v406
  %1266 = vmatprep.subr.mxu0 %v405
  %1267 = vmatpush1.msra.mxu0 %v404
  %1268 = vmatprep.subr.mxu0 %v403
  %1269 = vmatpush1.msra.mxu0 %v402
  %1270 = vmatprep.subr.mxu0 0.0
  %1271 = vmatpush2.msra.mxu0 0.0
  %1272 = vmatprep.subr.mxu0 0.0
  %1273 = vmatpush2.msra.mxu0 0.0
  %1274 = vmatprep.subr.mxu0 0.0
  %1275 = vmatpush2.msra.mxu0 0.0
  %1276 = vmatprep.subr.mxu0 0.0
  %1277 = vmatpush2.msra.mxu0 0.0
  %1278 = vmatprep.subr.mxu0 0.0
  %1279 = vmatpush2.msra.mxu0 0.0
  %1280 = vmatprep.subr.mxu0 0.0
  %1281 = vmatpush2.msra.mxu0 0.0
  %1282 = vmatprep.subr.mxu0 0.0
  %1283 = vmatpush2.msra.mxu0 0.0
  %1284 = vmatprep.subr.mxu0 0.0
  %1285 = vmatpush2.msra.mxu0 0.0
  %1286 = vmatprep.subr.mxu0 0.0
  %1287 = vmatpush2.msra.mxu0 0.0
  %1288 = vmatprep.subr.mxu0 0.0
  %1289 = vmatpush2.msra.mxu0 0.0
  %1290 = vmatprep.subr.mxu0 0.0
  %1291 = vmatpush2.msra.mxu0 0.0
  %1292 = vmatprep.subr.mxu0 0.0
  %1293 = vmatpush2.msra.mxu0 0.0
  %1294 = vmatprep.subr.mxu0 0.0
  %1295 = vmatpush2.msra.mxu0 0.0
  %1296 = vmatprep.subr.mxu0 0.0
  %1297 = vmatpush2.msra.mxu0 0.0
  %1298 = vmatprep.subr.mxu0 0.0
  %1299 = vmatpush2.msra.mxu0 0.0
  %1300 = vmatprep.subr.mxu0 0.0
  %1301 = vmatpush2.msra.mxu0 0.0
  %1302 = vmatprep.mubr.f32.mxu0 0.0
  %1303 = vmatmul.mubr.f32.gmra.mxu0 %v1236
  %v1304 = vpop.f32.mrf.mxu0
  %v1305 = vadd.f32 0.0, %v1304
  %v1306 = vpop.f32.mrf.mxu0
  %v1307 = vadd.f32 0.0, %v1306
  %1308 = vdwg.mxu0
  %v1309 = vadd.f32 %v364, %v1305
  %v1310 = vtanh.pop %v1309
  %v1311 = vxor.u32 %v1309, 2147483648
  %v1312 = vmul.f32 %v1311, 1.442695
  %v1313 = vpow.pop %v1312
  %v1314 = vadd.f32 %v1313, 1.0
  %v1315 = vrcp.pop %v1314
  %v1316 = vmul.f32 1.0, %v1315
  %v1317 = vsel %vm370, %v1310, %v1316
  %v1318 = vmul.f32 %v1317, %v1193
  %1320 = vrot.lane.b32.xlu0 %v1317, 64
  %v1321 = vpop.permute.xlu0 %1320
  %v1323 = vmul.f32 %v1317, %v1321
  %1325 = vrot.lane.b32.xlu0 %v1323, 32
  %v1326 = vpop.permute.xlu0 %1325
  %v1328 = vadd.f32 %v1318, %v1326
  %v1329 = vtanh.pop %v1328
  %1331 = vrot.lane.b32.xlu0 %v1329, 64
  %v1332 = vpop.permute.xlu0 %1331
  %v1334 = vmul.f32 %v1317, %v1332
  %v1335 = vadd.f32 %v1307, %v523
  %v1336 = vtanh.pop %v1335
  %v1337 = vxor.u32 %v1335, 2147483648
  %v1338 = vmul.f32 %v1337, 1.442695
  %v1339 = vpow.pop %v1338
  %v1340 = vadd.f32 %v1339, 1.0
  %v1341 = vrcp.pop %v1340
  %v1342 = vmul.f32 1.0, %v1341
  %v1343 = vsel %vm370, %v1336, %v1342
  %v1344 = vmul.f32 %v1343, %v1219
  %1346 = vrot.lane.b32.xlu0 %v1343, 64
  %v1347 = vpop.permute.xlu0 %1346
  %v1349 = vmul.f32 %v1343, %v1347
  %1351 = vrot.lane.b32.xlu0 %v1349, 32
  %v1352 = vpop.permute.xlu0 %1351
  %v1354 = vadd.f32 %v1344, %v1352
  %v1355 = vtanh.pop %v1354
  %1357 = vrot.lane.b32.xlu0 %v1355, 64
  %v1358 = vpop.permute.xlu0 %1357
  %v1360 = vmul.f32 %v1343, %v1358
  %1362 = vrot.lane.b32.xlu0 %v1334, 32
  %v1363 = vpop.permute.xlu0 %1362
  %1366 = vrot.lane.b32.xlu0 %v1360, 64
  %v1367 = vpop.permute.xlu0 %1366
  %v1369 = vsel %vm400, %v1363, %v1367
  %v1371 = vsel %vm418, %v1369, 0
  %1373 = vmatprep.subr.mxu0 0.0
  %1374 = vmatpush1.msra.mxu0 0.0
  %1375 = vmatprep.subr.mxu0 0.0
  %1376 = vmatpush1.msra.mxu0 0.0
  %1377 = vmatprep.subr.mxu0 0.0
  %1378 = vmatpush1.msra.mxu0 0.0
  %1379 = vmatprep.subr.mxu0 0.0
  %1380 = vmatpush1.msra.mxu0 0.0
  %1381 = vmatprep.subr.mxu0 0.0
  %1382 = vmatpush1.msra.mxu0 0.0
  %1383 = vmatprep.subr.mxu0 0.0
  %1384 = vmatpush1.msra.mxu0 0.0
  %1385 = vmatprep.subr.mxu0 0.0
  %1386 = vmatpush1.msra.mxu0 0.0
  %1387 = vmatprep.subr.mxu0 0.0
  %1388 = vmatpush1.msra.mxu0 0.0
  %1389 = vmatprep.subr.mxu0 0.0
  %1390 = vmatpush1.msra.mxu0 %v417
  %1391 = vmatprep.subr.mxu0 0.0
  %1392 = vmatpush1.msra.mxu0 %v415
  %1393 = vmatprep.subr.mxu0 0.0
  %1394 = vmatpush1.msra.mxu0 %v413
  %1395 = vmatprep.subr.mxu0 0.0
  %1396 = vmatpush1.msra.mxu0 %v411
  %1397 = vmatprep.subr.mxu0 0.0
  %1398 = vmatpush1.msra.mxu0 %v409
  %1399 = vmatprep.subr.mxu0 0.0
  %1400 = vmatpush1.msra.mxu0 %v407
  %1401 = vmatprep.subr.mxu0 0.0
  %1402 = vmatpush1.msra.mxu0 %v405
  %1403 = vmatprep.subr.mxu0 0.0
  %1404 = vmatpush1.msra.mxu0 %v403
  %1405 = vmatprep.subr.mxu0 0.0
  %1406 = vmatpush2.msra.mxu0 0.0
  %1407 = vmatprep.subr.mxu0 0.0
  %1408 = vmatpush2.msra.mxu0 0.0
  %1409 = vmatprep.subr.mxu0 0.0
  %1410 = vmatpush2.msra.mxu0 0.0
  %1411 = vmatprep.subr.mxu0 0.0
  %1412 = vmatpush2.msra.mxu0 0.0
  %1413 = vmatprep.subr.mxu0 0.0
  %1414 = vmatpush2.msra.mxu0 0.0
  %1415 = vmatprep.subr.mxu0 0.0
  %1416 = vmatpush2.msra.mxu0 0.0
  %1417 = vmatprep.subr.mxu0 0.0
  %1418 = vmatpush2.msra.mxu0 0.0
  %1419 = vmatprep.subr.mxu0 0.0
  %1420 = vmatpush2.msra.mxu0 0.0
  %1421 = vmatprep.subr.mxu0 0.0
  %1422 = vmatpush2.msra.mxu0 0.0
  %1423 = vmatprep.subr.mxu0 0.0
  %1424 = vmatpush2.msra.mxu0 0.0
  %1425 = vmatprep.subr.mxu0 0.0
  %1426 = vmatpush2.msra.mxu0 0.0
  %1427 = vmatprep.subr.mxu0 0.0
  %1428 = vmatpush2.msra.mxu0 0.0
  %1429 = vmatprep.subr.mxu0 0.0
  %1430 = vmatpush2.msra.mxu0 0.0
  %1431 = vmatprep.subr.mxu0 0.0
  %1432 = vmatpush2.msra.mxu0 0.0
  %1433 = vmatprep.subr.mxu0 0.0
  %1434 = vmatpush2.msra.mxu0 0.0
  %1435 = vmatprep.subr.mxu0 0.0
  %1436 = vmatpush2.msra.mxu0 0.0
  %1437 = vmatprep.mubr.f32.mxu0 0.0
  %1438 = vmatmul.mubr.f32.gmra.mxu0 %v1371
  %v1439 = vpop.f32.mrf.mxu0
  %v1440 = vadd.f32 %v523, %v1439
  %v1441 = vpop.f32.mrf.mxu0
  %1442 = vdwg.mxu0
  %v1443 = vtanh.pop %v1440
  %v1444 = vxor.u32 %v1440, 2147483648
  %v1445 = vmul.f32 %v1444, 1.442695
  %v1446 = vpow.pop %v1445
  %v1447 = vadd.f32 %v1446, 1.0
  %v1448 = vrcp.pop %v1447
  %v1449 = vmul.f32 1.0, %v1448
  %v1450 = vsel %vm370, %v1443, %v1449
  %v1451 = vmul.f32 %v1450, %v1354
  %1453 = vrot.lane.b32.xlu0 %v1450, 64
  %v1454 = vpop.permute.xlu0 %1453
  %v1456 = vmul.f32 %v1450, %v1454
  %1458 = vrot.lane.b32.xlu0 %v1456, 32
  %v1459 = vpop.permute.xlu0 %1458
  %v1461 = vadd.f32 %v1451, %v1459
  %v1462 = vtanh.pop %v1461
  %1464 = vrot.lane.b32.xlu0 %v1462, 64
  %v1465 = vpop.permute.xlu0 %1464
  %v1467 = vmul.f32 %v1450, %v1465
  %v1468 = vld [vmem:[%s9] sm:$0xff]
  %v1469 = vld [vmem:[%s9 + $0x8] sm:$0xff]
  %v1470 = vld [vmem:[%s9 + $0x10] sm:$0xff]
  %v1471 = vld [vmem:[%s9 + $0x18] sm:$0xff]
  %v1472 = vld [vmem:[%s10] sm:$0x1]
  %v1474 = vlaneseq
  %v1475 = vshrl.u32 %v1474, 7
  %v1476 = vsub.s32 0, %v1475
  %v1477 = vrot.slane %v1472, %v1476
  %1480 = vrot.lane.b32.xlu0 %v1467, 32
  %v1481 = vpop.permute.xlu0 %1480
  %v1482 = vsel %vm400, %v1481, 0
  %1484 = vmatprep.subr.mxu0 0.0
  %1485 = vmatpush1.msra.mxu0 0.0
  %1486 = vmatprep.subr.mxu0 0.0
  %1487 = vmatpush1.msra.mxu0 0.0
  %1488 = vmatprep.subr.mxu0 0.0
  %1489 = vmatpush1.msra.mxu0 0.0
  %1490 = vmatprep.subr.mxu0 0.0
  %1491 = vmatpush1.msra.mxu0 0.0
  %1492 = vmatprep.subr.mxu0 0.0
  %1493 = vmatpush1.msra.mxu0 0.0
  %1494 = vmatprep.subr.mxu0 0.0
  %1495 = vmatpush1.msra.mxu0 0.0
  %1496 = vmatprep.subr.mxu0 0.0
  %1497 = vmatpush1.msra.mxu0 0.0
  %1498 = vmatprep.subr.mxu0 0.0
  %1499 = vmatpush1.msra.mxu0 0.0
  %1500 = vmatprep.subr.mxu0 0.0
  %1501 = vmatpush1.msra.mxu0 0.0
  %1502 = vmatprep.subr.mxu0 0.0
  %1503 = vmatpush1.msra.mxu0 0.0
  %1504 = vmatprep.subr.mxu0 0.0
  %1505 = vmatpush1.msra.mxu0 0.0
  %1506 = vmatprep.subr.mxu0 0.0
  %1507 = vmatpush1.msra.mxu0 0.0
  %1508 = vmatprep.subr.mxu0 0.0
  %1509 = vmatpush1.msra.mxu0 %v1471
  %1510 = vmatprep.subr.mxu0 0.0
  %1511 = vmatpush1.msra.mxu0 %v1470
  %1512 = vmatprep.subr.mxu0 0.0
  %1513 = vmatpush1.msra.mxu0 %v1469
  %1514 = vmatprep.subr.mxu0 0.0
  %1515 = vmatpush1.msra.mxu0 %v1468
  %1516 = vmatprep.subr.mxu0 0.0
  %1517 = vmatpush2.msra.mxu0 0.0
  %1518 = vmatprep.subr.mxu0 0.0
  %1519 = vmatpush2.msra.mxu0 0.0
  %1520 = vmatprep.subr.mxu0 0.0
  %1521 = vmatpush2.msra.mxu0 0.0
  %1522 = vmatprep.subr.mxu0 0.0
  %1523 = vmatpush2.msra.mxu0 0.0
  %1524 = vmatprep.subr.mxu0 0.0
  %1525 = vmatpush2.msra.mxu0 0.0
  %1526 = vmatprep.subr.mxu0 0.0
  %1527 = vmatpush2.msra.mxu0 0.0
  %1528 = vmatprep.subr.mxu0 0.0
  %1529 = vmatpush2.msra.mxu0 0.0
  %1530 = vmatprep.subr.mxu0 0.0
  %1531 = vmatpush2.msra.mxu0 0.0
  %1532 = vmatprep.subr.mxu0 0.0
  %1533 = vmatpush2.msra.mxu0 0.0
  %1534 = vmatprep.subr.mxu0 0.0
  %1535 = vmatpush2.msra.mxu0 0.0
  %1536 = vmatprep.subr.mxu0 0.0
  %1537 = vmatpush2.msra.mxu0 0.0
  %1538 = vmatprep.subr.mxu0 0.0
  %1539 = vmatpush2.msra.mxu0 0.0
  %1540 = vmatprep.subr.mxu0 0.0
  %1541 = vmatpush2.msra.mxu0 0.0
  %1542 = vmatprep.subr.mxu0 0.0
  %1543 = vmatpush2.msra.mxu0 0.0
  %1544 = vmatprep.subr.mxu0 0.0
  %1545 = vmatpush2.msra.mxu0 0.0
  %1546 = vmatprep.subr.mxu0 0.0
  %1547 = vmatpush2.msra.mxu0 0.0
  %1548 = vmatprep.mubr.f32.mxu0 0.0
  %1549 = vmatmul.mubr.f32.gmra.mxu0 %v1482
  %v1550 = vpop.f32.mrf.mxu0
  %v1551 = vadd.f32 %v1477, %v1550
  %v1552 = vpop.f32.mrf.mxu0
  %1553 = vdwg.mxu0
  %vm1554 = vcmask 31744
  %1555 = vst.msk [vmem:[%s11] sm:$0xff] %vm1554, %v1551
  // Predicated region
  $region46: #{custom_bilstm_forward.1} parent=0 // pred_check
    _
  $region47: #{custom_bilstm_forward.1} parent=0 // pred_check_branch
    %1557 = sbr.rel (0) target = $region49
  $region48: #{custom_bilstm_forward.1} parent=0 // pred_region
    _
  $region49: #{custom_bilstm_forward.1} parent=0 // pred_fallthru
    _
  // Predicated region
  $region50: #{custom_bilstm_forward.1} parent=0 // pred_check
    _
  $region51: #{custom_bilstm_forward.1} parent=0 // pred_check_branch
    %1559 = sbr.rel (0) target = $region53
  $region52: #{custom_bilstm_forward.1} parent=0 // pred_region
    _
  $region53: #{custom_bilstm_forward.1} parent=0 // pred_fallthru
    _

</llo_original>
